<compile_context>
chip_gen: v7x
topology: tpu7x:2x2x1
jax: 0.10.0
libtpu: 0.0.40
codegen_flags: <defaults>
</compile_context>

<pallas_src>
import functools

import jax
import jax.numpy as jnp
from jax import lax
from jax.experimental import pallas as pl
from jax.experimental.pallas import tpu as pltpu


def _attention_kernel(x_ref, wqkv_ref, wproj_ref, bproj_ref, o_ref, acc_ref,
                      *, num_heads, q_tile, compute_dtype):
    """One batch element per grid step: fused QKV proj + MHSA + output proj."""
    x = x_ref[0]                                     # (N, C) in compute_dtype
    N, C = x.shape
    D = C // num_heads

    # Fused QKV projection: one large MXU matmul, f32 accumulation.
    # (Q columns of wqkv were pre-scaled by head_dim**-0.5 on the host.)
    qkv = jnp.dot(x, wqkv_ref[...], preferred_element_type=jnp.float32)   # (N, 3C) f32

    for h in range(num_heads):
        q_h = qkv[:, h * D:(h + 1) * D].astype(compute_dtype)             # (N, D)
        k_h = qkv[:, C + h * D:C + (h + 1) * D].astype(compute_dtype)     # (N, D)
        v_h = qkv[:, 2 * C + h * D:2 * C + (h + 1) * D].astype(compute_dtype)

        # Tile the query rows so the live score block is (q_tile, N), not (N, N).
        for q0 in range(0, N, q_tile):
            tq = min(q_tile, N - q0)
            qt = q_h[q0:q0 + tq]                                          # (tq, D)

            # Scores: contract the last dim of both operands (no kh.T / XLU transpose);
            # scale is already folded into q via the pre-scaled QKV weight.
            s = lax.dot_general(qt, k_h, (((1,), (1,)), ((), ())),
                                preferred_element_type=jnp.float32)       # (tq, N) f32

            # Numerically-stable softmax in f32; EUP reciprocal instead of a VALU divide.
            m = jnp.max(s, axis=-1, keepdims=True)
            p = jnp.exp(s - m)
            denom = jnp.sum(p, axis=-1, keepdims=True)
            p = p * pl.reciprocal(denom, approx=True)

            # TODO(synk): optional boolean `mask` path (masked_fill with -1e10) not wired in;
            # attn_drop / proj_drop are identity at p=0.0 and therefore omitted.

            o_h = jnp.dot(p.astype(compute_dtype), v_h,
                          preferred_element_type=jnp.float32)             # (tq, D) f32

            # Write straight into the lane-dense (N, C) scratch (replaces the head concat).
            acc_ref[q0:q0 + tq, h * D:(h + 1) * D] = o_h

    # Output projection + bias; bf16 matmul operands, f32 accumulation and bias add.
    out = jnp.dot(acc_ref[...].astype(compute_dtype), wproj_ref[...],
                  preferred_element_type=jnp.float32) + bproj_ref[...]
    o_ref[0] = out.astype(o_ref.dtype)


def attention_pallas(x, w_qkv_t, w_proj_t, b_proj, *, num_heads,
                     q_tile=256, use_bf16=True):
    """Multi-head self-attention matching the PyTorch module forward (mask=None)."""
    B, N, C = x.shape
    assert C % num_heads == 0
    D = C // num_heads
    scale = D ** (-0.5)
    compute_dtype = jnp.bfloat16 if use_bf16 else jnp.float32

    # Fold the softmax scale into the Q third of the QKV weight (host-side, free).
    w_qkv_scaled = w_qkv_t.at[:, :C].multiply(scale)

    x_c = x.astype(compute_dtype)
    w_qkv_c = w_qkv_scaled.astype(compute_dtype)
    w_proj_c = w_proj_t.astype(compute_dtype)
    b_proj2d = b_proj.reshape(1, C).astype(jnp.float32)

    kernel = functools.partial(_attention_kernel, num_heads=num_heads,
                               q_tile=q_tile, compute_dtype=compute_dtype)

    # Advisory cost estimate for XLA's scheduler around the custom call.
    itemsize = jnp.dtype(compute_dtype).itemsize
    flops = (2 * B * N * C * 3 * C                   # QKV projection
             + 2 * 2 * B * num_heads * N * N * D     # QK^T and PV
             + 2 * B * N * C * C)                    # output projection
    transcendentals = B * num_heads * N * N          # softmax exp
    bytes_accessed = (x_c.size * itemsize + w_qkv_c.size * itemsize
                      + w_proj_c.size * itemsize + b_proj2d.size * 4
                      + B * N * C * x.dtype.itemsize)
    cost = pl.CostEstimate(flops=flops, transcendentals=transcendentals,
                           bytes_accessed=bytes_accessed)

    # Rough per-grid-step VMEM footprint; raise the scoped limit only when needed,
    # capped at 64 MiB so the plan also fits v7x VMEM.
    vmem_est = (2 * N * C * itemsize                 # double-buffered x blocks
                + 2 * N * C * x.dtype.itemsize       # double-buffered out blocks
                + 2 * (3 * C * C + C * C) * itemsize + 2 * C * 4  # weights + bias
                + N * 3 * C * 4                      # qkv (f32)
                + N * C * 4                          # attention scratch (f32)
                + 3 * min(q_tile, N) * N * 4)        # score / prob working set
    vmem_limit = None
    if vmem_est > 12 * 1024 * 1024:
        vmem_limit = int(min(max(2 * vmem_est, 32 * 1024 * 1024), 64 * 1024 * 1024))

    return pl.pallas_call(
        kernel,
        out_shape=jax.ShapeDtypeStruct((B, N, C), x.dtype),
        grid_spec=pltpu.PrefetchScalarGridSpec(
            num_scalar_prefetch=0,
            grid=(B,),
            in_specs=[
                pl.BlockSpec((1, N, C), lambda b: (b, 0, 0)),
                pl.BlockSpec((C, 3 * C), lambda b: (0, 0)),
                pl.BlockSpec((C, C), lambda b: (0, 0)),
                pl.BlockSpec((1, C), lambda b: (0, 0)),
            ],
            out_specs=pl.BlockSpec((1, N, C), lambda b: (b, 0, 0)),
            scratch_shapes=[pltpu.VMEM((N, C), jnp.float32)],
        ),
        compiler_params=pltpu.CompilerParams(
            dimension_semantics=("parallel",),
            vmem_limit_bytes=vmem_limit),
        cost_estimate=cost,
    )(x_c, w_qkv_c, w_proj_c, b_proj2d)


def attention_reference(x, w_qkv_t, w_proj_t, b_proj, *, num_heads):
    """Pure-JAX f32 reference mirroring the PyTorch forward."""
    B, N, C = x.shape
    D = C // num_heads
    scale = D ** (-0.5)
    qkv = jnp.einsum('bnc,cd->bnd', x, w_qkv_t)                   # (B, N, 3C)
    qkv = qkv.reshape(B, N, 3, num_heads, D).transpose(2, 0, 3, 1, 4)
    q, k, v = qkv[0], qkv[1], qkv[2]                              # (B, H, N, D)
    attn = jnp.einsum('bhnd,bhmd->bhnm', q, k) * scale
    attn = jax.nn.softmax(attn, axis=-1)
    out = jnp.einsum('bhnm,bhmd->bhnd', attn, v)                  # (B, H, N, D)
    out = out.transpose(0, 2, 1, 3).reshape(B, N, C)
    return jnp.einsum('bnc,cd->bnd', out, w_proj_t) + b_proj


if __name__ == "__main__":
    # Small, lane-dense shapes: B=2, seq N=16, dim C=128 (multiple of 128 lanes),
    # 8 heads -> head_dim D=16.
    B, N, C, H = 2, 16, 128, 8

    key = jax.random.PRNGKey(0)
    kx, kw1, kw2, kb = jax.random.split(key, 4)

    x = jax.random.normal(kx, (B, N, C), dtype=jnp.float32)
    # PyTorch Linear weights are (out, in); store transposed for x @ W.
    w_qkv_t = jax.random.normal(kw1, (C, 3 * C), dtype=jnp.float32) * 0.05
    w_proj_t = jax.random.normal(kw2, (C, C), dtype=jnp.float32) * 0.05
    b_proj = jax.random.normal(kb, (C,), dtype=jnp.float32) * 0.05

    ref = attention_reference(x, w_qkv_t, w_proj_t, b_proj, num_heads=H)

    # f32 compute path: tight check against the pure-JAX reference.
    out_f32 = jax.block_until_ready(
        attention_pallas(x, w_qkv_t, w_proj_t, b_proj, num_heads=H, use_bf16=False))
    assert out_f32.shape == (B, N, C)
    assert jnp.allclose(out_f32, ref, atol=5e-3, rtol=5e-3), (
        f"f32 mismatch: max abs diff {jnp.max(jnp.abs(out_f32 - ref))}")

    # bf16 matmul path (f32 accumulation): looser tolerance vs the f32 reference.
    out_bf16 = jax.block_until_ready(
        attention_pallas(x, w_qkv_t, w_proj_t, b_proj, num_heads=H, use_bf16=True))
    assert out_bf16.shape == (B, N, C)
    assert jnp.allclose(out_bf16, ref, atol=3e-2, rtol=3e-2), (
        f"bf16 mismatch: max abs diff {jnp.max(jnp.abs(out_bf16 - ref))}")

    print("KERNEL_OK")
</pallas_src>

<mosaic_0001>
module attributes {stable_mosaic.version = 11 : i64} {
  func.func @_attention_kernel(%arg0: i32, %arg1: memref<1x16x128xf32, #tpu.memory_space<vmem>>, %arg2: memref<128x384xf32, #tpu.memory_space<vmem>>, %arg3: memref<128x128xf32, #tpu.memory_space<vmem>>, %arg4: memref<1x128xf32, #tpu.memory_space<vmem>>, %arg5: memref<1x16x128xf32, #tpu.memory_space<vmem>>, %arg6: memref<16x128xf32, #tpu.memory_space<vmem>>) attributes {dimension_semantics = [#tpu.dimension_semantics<parallel>], iteration_bounds = array<i64: 2>, scalar_prefetch = 0 : i64, scratch_operands = 1 : i64, tpu.core_type = #tpu.core_type<tc>, window_params = [{transform_indices = @transform_0, window_bounds = array<i64: 1, 16, 128>}, {pipeline_mode = #tpu.pipeline_mode<synchronous>, transform_indices = @transform_1, window_bounds = array<i64: 128, 384>}, {pipeline_mode = #tpu.pipeline_mode<synchronous>, transform_indices = @transform_2, window_bounds = array<i64: 128, 128>}, {pipeline_mode = #tpu.pipeline_mode<synchronous>, transform_indices = @transform_3, window_bounds = array<i64: 1, 128>}, {transform_indices = @transform_4, window_bounds = array<i64: 1, 16, 128>}]} {
    %c0 = arith.constant 0 : index
    %c0_0 = arith.constant 0 : index
    %c0_1 = arith.constant 0 : index
    %0 = vector.load %arg1[%c0, %c0_0, %c0_1] : memref<1x16x128xf32, #tpu.memory_space<vmem>>, vector<1x16x128xf32>
    %1 = vector.shape_cast %0 : vector<1x16x128xf32> to vector<16x128xf32>
    %c0_2 = arith.constant 0 : index
    %c0_3 = arith.constant 0 : index
    %2 = vector.load %arg2[%c0_2, %c0_3] : memref<128x384xf32, #tpu.memory_space<vmem>>, vector<128x384xf32>
    %cst = arith.constant dense<0.000000e+00> : vector<16x384xf32>
    %3 = tpu.matmul %1, %2, %cst {dimension_numbers = #tpu.dot_dimension_numbers<[1], [0], [0], [1], [0, 0, 1, 1], [], []>} : vector<16x128xf32>, vector<128x384xf32>, vector<16x384xf32> -> vector<16x384xf32>
    %4 = vector.extract_strided_slice %3 {offsets = [0, 0], sizes = [16, 16], strides = [1, 1]} : vector<16x384xf32> to vector<16x16xf32>
    %5 = vector.extract_strided_slice %3 {offsets = [0, 128], sizes = [16, 16], strides = [1, 1]} : vector<16x384xf32> to vector<16x16xf32>
    %6 = vector.extract_strided_slice %3 {offsets = [0, 256], sizes = [16, 16], strides = [1, 1]} : vector<16x384xf32> to vector<16x16xf32>
    %cst_4 = arith.constant dense<0.000000e+00> : vector<16x16xf32>
    %7 = tpu.matmul %4, %5, %cst_4 {dimension_numbers = #tpu.dot_dimension_numbers<[1], [1], [0], [0], [0, 0, 1, 0], [], []>} : vector<16x16xf32>, vector<16x16xf32>, vector<16x16xf32> -> vector<16x16xf32>
    %cst_5 = arith.constant dense<0xFF800000> : vector<16xf32>
    %8 = vector.multi_reduction <maximumf>, %7, %cst_5 [1] : vector<16x16xf32> to vector<16xf32>
    %9 = vector.shape_cast %8 : vector<16xf32> to vector<16x1xf32>
    %10 = vector.broadcast %9 : vector<16x1xf32> to vector<16x16xf32>
    %11 = arith.subf %7, %10 : vector<16x16xf32>
    %12 = math.exp %11 : vector<16x16xf32>
    %cst_6 = arith.constant dense<0.000000e+00> : vector<16xf32>
    %13 = vector.multi_reduction <add>, %12, %cst_6 [1] : vector<16x16xf32> to vector<16xf32>
    %14 = vector.shape_cast %13 : vector<16xf32> to vector<16x1xf32>
    %15 = tpu.reciprocal %14 {approx = true} : vector<16x1xf32> -> vector<16x1xf32>
    %16 = vector.broadcast %15 : vector<16x1xf32> to vector<16x16xf32>
    %17 = arith.mulf %12, %16 : vector<16x16xf32>
    %cst_7 = arith.constant dense<0.000000e+00> : vector<16x16xf32>
    %18 = tpu.matmul %17, %6, %cst_7 {dimension_numbers = #tpu.dot_dimension_numbers<[1], [0], [0], [1], [0, 0, 1, 1], [], []>} : vector<16x16xf32>, vector<16x16xf32>, vector<16x16xf32> -> vector<16x16xf32>
    %c0_8 = arith.constant 0 : index
    %c0_9 = arith.constant 0 : index
    %19 = vector.load %arg6[%c0_8, %c0_9] : memref<16x128xf32, #tpu.memory_space<vmem>>, vector<16x16xf32>
    tpu.vector_store %arg6[%c0_8, %c0_9], %18 {strides = array<i32>} : memref<16x128xf32, #tpu.memory_space<vmem>>, vector<16x16xf32>,
    %20 = vector.extract_strided_slice %3 {offsets = [0, 16], sizes = [16, 16], strides = [1, 1]} : vector<16x384xf32> to vector<16x16xf32>
    %21 = vector.extract_strided_slice %3 {offsets = [0, 144], sizes = [16, 16], strides = [1, 1]} : vector<16x384xf32> to vector<16x16xf32>
    %22 = vector.extract_strided_slice %3 {offsets = [0, 272], sizes = [16, 16], strides = [1, 1]} : vector<16x384xf32> to vector<16x16xf32>
    %cst_10 = arith.constant dense<0.000000e+00> : vector<16x16xf32>
    %23 = tpu.matmul %20, %21, %cst_10 {dimension_numbers = #tpu.dot_dimension_numbers<[1], [1], [0], [0], [0, 0, 1, 0], [], []>} : vector<16x16xf32>, vector<16x16xf32>, vector<16x16xf32> -> vector<16x16xf32>
    %cst_11 = arith.constant dense<0xFF800000> : vector<16xf32>
    %24 = vector.multi_reduction <maximumf>, %23, %cst_11 [1] : vector<16x16xf32> to vector<16xf32>
    %25 = vector.shape_cast %24 : vector<16xf32> to vector<16x1xf32>
    %26 = vector.broadcast %25 : vector<16x1xf32> to vector<16x16xf32>
    %27 = arith.subf %23, %26 : vector<16x16xf32>
    %28 = math.exp %27 : vector<16x16xf32>
    %cst_12 = arith.constant dense<0.000000e+00> : vector<16xf32>
    %29 = vector.multi_reduction <add>, %28, %cst_12 [1] : vector<16x16xf32> to vector<16xf32>
    %30 = vector.shape_cast %29 : vector<16xf32> to vector<16x1xf32>
    %31 = tpu.reciprocal %30 {approx = true} : vector<16x1xf32> -> vector<16x1xf32>
    %32 = vector.broadcast %31 : vector<16x1xf32> to vector<16x16xf32>
    %33 = arith.mulf %28, %32 : vector<16x16xf32>
    %cst_13 = arith.constant dense<0.000000e+00> : vector<16x16xf32>
    %34 = tpu.matmul %33, %22, %cst_13 {dimension_numbers = #tpu.dot_dimension_numbers<[1], [0], [0], [1], [0, 0, 1, 1], [], []>} : vector<16x16xf32>, vector<16x16xf32>, vector<16x16xf32> -> vector<16x16xf32>
    %c0_14 = arith.constant 0 : index
    %c16 = arith.constant 16 : index
    %35 = vector.load %arg6[%c0_14, %c16] : memref<16x128xf32, #tpu.memory_space<vmem>>, vector<16x16xf32>
    tpu.vector_store %arg6[%c0_14, %c16], %34 {strides = array<i32>} : memref<16x128xf32, #tpu.memory_space<vmem>>, vector<16x16xf32>,
    %36 = vector.extract_strided_slice %3 {offsets = [0, 32], sizes = [16, 16], strides = [1, 1]} : vector<16x384xf32> to vector<16x16xf32>
    %37 = vector.extract_strided_slice %3 {offsets = [0, 160], sizes = [16, 16], strides = [1, 1]} : vector<16x384xf32> to vector<16x16xf32>
    %38 = vector.extract_strided_slice %3 {offsets = [0, 288], sizes = [16, 16], strides = [1, 1]} : vector<16x384xf32> to vector<16x16xf32>
    %cst_15 = arith.constant dense<0.000000e+00> : vector<16x16xf32>
    %39 = tpu.matmul %36, %37, %cst_15 {dimension_numbers = #tpu.dot_dimension_numbers<[1], [1], [0], [0], [0, 0, 1, 0], [], []>} : vector<16x16xf32>, vector<16x16xf32>, vector<16x16xf32> -> vector<16x16xf32>
    %cst_16 = arith.constant dense<0xFF800000> : vector<16xf32>
    %40 = vector.multi_reduction <maximumf>, %39, %cst_16 [1] : vector<16x16xf32> to vector<16xf32>
    %41 = vector.shape_cast %40 : vector<16xf32> to vector<16x1xf32>
    %42 = vector.broadcast %41 : vector<16x1xf32> to vector<16x16xf32>
    %43 = arith.subf %39, %42 : vector<16x16xf32>
    %44 = math.exp %43 : vector<16x16xf32>
    %cst_17 = arith.constant dense<0.000000e+00> : vector<16xf32>
    %45 = vector.multi_reduction <add>, %44, %cst_17 [1] : vector<16x16xf32> to vector<16xf32>
    %46 = vector.shape_cast %45 : vector<16xf32> to vector<16x1xf32>
    %47 = tpu.reciprocal %46 {approx = true} : vector<16x1xf32> -> vector<16x1xf32>
    %48 = vector.broadcast %47 : vector<16x1xf32> to vector<16x16xf32>
    %49 = arith.mulf %44, %48 : vector<16x16xf32>
    %cst_18 = arith.constant dense<0.000000e+00> : vector<16x16xf32>
    %50 = tpu.matmul %49, %38, %cst_18 {dimension_numbers = #tpu.dot_dimension_numbers<[1], [0], [0], [1], [0, 0, 1, 1], [], []>} : vector<16x16xf32>, vector<16x16xf32>, vector<16x16xf32> -> vector<16x16xf32>
    %c0_19 = arith.constant 0 : index
    %c32 = arith.constant 32 : index
    %51 = vector.load %arg6[%c0_19, %c32] : memref<16x128xf32, #tpu.memory_space<vmem>>, vector<16x16xf32>
    tpu.vector_store %arg6[%c0_19, %c32], %50 {strides = array<i32>} : memref<16x128xf32, #tpu.memory_space<vmem>>, vector<16x16xf32>,
    %52 = vector.extract_strided_slice %3 {offsets = [0, 48], sizes = [16, 16], strides = [1, 1]} : vector<16x384xf32> to vector<16x16xf32>
    %53 = vector.extract_strided_slice %3 {offsets = [0, 176], sizes = [16, 16], strides = [1, 1]} : vector<16x384xf32> to vector<16x16xf32>
    %54 = vector.extract_strided_slice %3 {offsets = [0, 304], sizes = [16, 16], strides = [1, 1]} : vector<16x384xf32> to vector<16x16xf32>
    %cst_20 = arith.constant dense<0.000000e+00> : vector<16x16xf32>
    %55 = tpu.matmul %52, %53, %cst_20 {dimension_numbers = #tpu.dot_dimension_numbers<[1], [1], [0], [0], [0, 0, 1, 0], [], []>} : vector<16x16xf32>, vector<16x16xf32>, vector<16x16xf32> -> vector<16x16xf32>
    %cst_21 = arith.constant dense<0xFF800000> : vector<16xf32>
    %56 = vector.multi_reduction <maximumf>, %55, %cst_21 [1] : vector<16x16xf32> to vector<16xf32>
    %57 = vector.shape_cast %56 : vector<16xf32> to vector<16x1xf32>
    %58 = vector.broadcast %57 : vector<16x1xf32> to vector<16x16xf32>
    %59 = arith.subf %55, %58 : vector<16x16xf32>
    %60 = math.exp %59 : vector<16x16xf32>
    %cst_22 = arith.constant dense<0.000000e+00> : vector<16xf32>
    %61 = vector.multi_reduction <add>, %60, %cst_22 [1] : vector<16x16xf32> to vector<16xf32>
    %62 = vector.shape_cast %61 : vector<16xf32> to vector<16x1xf32>
    %63 = tpu.reciprocal %62 {approx = true} : vector<16x1xf32> -> vector<16x1xf32>
    %64 = vector.broadcast %63 : vector<16x1xf32> to vector<16x16xf32>
    %65 = arith.mulf %60, %64 : vector<16x16xf32>
    %cst_23 = arith.constant dense<0.000000e+00> : vector<16x16xf32>
    %66 = tpu.matmul %65, %54, %cst_23 {dimension_numbers = #tpu.dot_dimension_numbers<[1], [0], [0], [1], [0, 0, 1, 1], [], []>} : vector<16x16xf32>, vector<16x16xf32>, vector<16x16xf32> -> vector<16x16xf32>
    %c0_24 = arith.constant 0 : index
    %c48 = arith.constant 48 : index
    %67 = vector.load %arg6[%c0_24, %c48] : memref<16x128xf32, #tpu.memory_space<vmem>>, vector<16x16xf32>
    tpu.vector_store %arg6[%c0_24, %c48], %66 {strides = array<i32>} : memref<16x128xf32, #tpu.memory_space<vmem>>, vector<16x16xf32>,
    %68 = vector.extract_strided_slice %3 {offsets = [0, 64], sizes = [16, 16], strides = [1, 1]} : vector<16x384xf32> to vector<16x16xf32>
    %69 = vector.extract_strided_slice %3 {offsets = [0, 192], sizes = [16, 16], strides = [1, 1]} : vector<16x384xf32> to vector<16x16xf32>
    %70 = vector.extract_strided_slice %3 {offsets = [0, 320], sizes = [16, 16], strides = [1, 1]} : vector<16x384xf32> to vector<16x16xf32>
    %cst_25 = arith.constant dense<0.000000e+00> : vector<16x16xf32>
    %71 = tpu.matmul %68, %69, %cst_25 {dimension_numbers = #tpu.dot_dimension_numbers<[1], [1], [0], [0], [0, 0, 1, 0], [], []>} : vector<16x16xf32>, vector<16x16xf32>, vector<16x16xf32> -> vector<16x16xf32>
    %cst_26 = arith.constant dense<0xFF800000> : vector<16xf32>
    %72 = vector.multi_reduction <maximumf>, %71, %cst_26 [1] : vector<16x16xf32> to vector<16xf32>
    %73 = vector.shape_cast %72 : vector<16xf32> to vector<16x1xf32>
    %74 = vector.broadcast %73 : vector<16x1xf32> to vector<16x16xf32>
    %75 = arith.subf %71, %74 : vector<16x16xf32>
    %76 = math.exp %75 : vector<16x16xf32>
    %cst_27 = arith.constant dense<0.000000e+00> : vector<16xf32>
    %77 = vector.multi_reduction <add>, %76, %cst_27 [1] : vector<16x16xf32> to vector<16xf32>
    %78 = vector.shape_cast %77 : vector<16xf32> to vector<16x1xf32>
    %79 = tpu.reciprocal %78 {approx = true} : vector<16x1xf32> -> vector<16x1xf32>
    %80 = vector.broadcast %79 : vector<16x1xf32> to vector<16x16xf32>
    %81 = arith.mulf %76, %80 : vector<16x16xf32>
    %cst_28 = arith.constant dense<0.000000e+00> : vector<16x16xf32>
    %82 = tpu.matmul %81, %70, %cst_28 {dimension_numbers = #tpu.dot_dimension_numbers<[1], [0], [0], [1], [0, 0, 1, 1], [], []>} : vector<16x16xf32>, vector<16x16xf32>, vector<16x16xf32> -> vector<16x16xf32>
    %c0_29 = arith.constant 0 : index
    %c64 = arith.constant 64 : index
    %83 = vector.load %arg6[%c0_29, %c64] : memref<16x128xf32, #tpu.memory_space<vmem>>, vector<16x16xf32>
    tpu.vector_store %arg6[%c0_29, %c64], %82 {strides = array<i32>} : memref<16x128xf32, #tpu.memory_space<vmem>>, vector<16x16xf32>,
    %84 = vector.extract_strided_slice %3 {offsets = [0, 80], sizes = [16, 16], strides = [1, 1]} : vector<16x384xf32> to vector<16x16xf32>
    %85 = vector.extract_strided_slice %3 {offsets = [0, 208], sizes = [16, 16], strides = [1, 1]} : vector<16x384xf32> to vector<16x16xf32>
    %86 = vector.extract_strided_slice %3 {offsets = [0, 336], sizes = [16, 16], strides = [1, 1]} : vector<16x384xf32> to vector<16x16xf32>
    %cst_30 = arith.constant dense<0.000000e+00> : vector<16x16xf32>
    %87 = tpu.matmul %84, %85, %cst_30 {dimension_numbers = #tpu.dot_dimension_numbers<[1], [1], [0], [0], [0, 0, 1, 0], [], []>} : vector<16x16xf32>, vector<16x16xf32>, vector<16x16xf32> -> vector<16x16xf32>
    %cst_31 = arith.constant dense<0xFF800000> : vector<16xf32>
    %88 = vector.multi_reduction <maximumf>, %87, %cst_31 [1] : vector<16x16xf32> to vector<16xf32>
    %89 = vector.shape_cast %88 : vector<16xf32> to vector<16x1xf32>
    %90 = vector.broadcast %89 : vector<16x1xf32> to vector<16x16xf32>
    %91 = arith.subf %87, %90 : vector<16x16xf32>
    %92 = math.exp %91 : vector<16x16xf32>
    %cst_32 = arith.constant dense<0.000000e+00> : vector<16xf32>
    %93 = vector.multi_reduction <add>, %92, %cst_32 [1] : vector<16x16xf32> to vector<16xf32>
    %94 = vector.shape_cast %93 : vector<16xf32> to vector<16x1xf32>
    %95 = tpu.reciprocal %94 {approx = true} : vector<16x1xf32> -> vector<16x1xf32>
    %96 = vector.broadcast %95 : vector<16x1xf32> to vector<16x16xf32>
    %97 = arith.mulf %92, %96 : vector<16x16xf32>
    %cst_33 = arith.constant dense<0.000000e+00> : vector<16x16xf32>
    %98 = tpu.matmul %97, %86, %cst_33 {dimension_numbers = #tpu.dot_dimension_numbers<[1], [0], [0], [1], [0, 0, 1, 1], [], []>} : vector<16x16xf32>, vector<16x16xf32>, vector<16x16xf32> -> vector<16x16xf32>
    %c0_34 = arith.constant 0 : index
    %c80 = arith.constant 80 : index
    %99 = vector.load %arg6[%c0_34, %c80] : memref<16x128xf32, #tpu.memory_space<vmem>>, vector<16x16xf32>
    tpu.vector_store %arg6[%c0_34, %c80], %98 {strides = array<i32>} : memref<16x128xf32, #tpu.memory_space<vmem>>, vector<16x16xf32>,
    %100 = vector.extract_strided_slice %3 {offsets = [0, 96], sizes = [16, 16], strides = [1, 1]} : vector<16x384xf32> to vector<16x16xf32>
    %101 = vector.extract_strided_slice %3 {offsets = [0, 224], sizes = [16, 16], strides = [1, 1]} : vector<16x384xf32> to vector<16x16xf32>
    %102 = vector.extract_strided_slice %3 {offsets = [0, 352], sizes = [16, 16], strides = [1, 1]} : vector<16x384xf32> to vector<16x16xf32>
    %cst_35 = arith.constant dense<0.000000e+00> : vector<16x16xf32>
    %103 = tpu.matmul %100, %101, %cst_35 {dimension_numbers = #tpu.dot_dimension_numbers<[1], [1], [0], [0], [0, 0, 1, 0], [], []>} : vector<16x16xf32>, vector<16x16xf32>, vector<16x16xf32> -> vector<16x16xf32>
    %cst_36 = arith.constant dense<0xFF800000> : vector<16xf32>
    %104 = vector.multi_reduction <maximumf>, %103, %cst_36 [1] : vector<16x16xf32> to vector<16xf32>
    %105 = vector.shape_cast %104 : vector<16xf32> to vector<16x1xf32>
    %106 = vector.broadcast %105 : vector<16x1xf32> to vector<16x16xf32>
    %107 = arith.subf %103, %106 : vector<16x16xf32>
    %108 = math.exp %107 : vector<16x16xf32>
    %cst_37 = arith.constant dense<0.000000e+00> : vector<16xf32>
    %109 = vector.multi_reduction <add>, %108, %cst_37 [1] : vector<16x16xf32> to vector<16xf32>
    %110 = vector.shape_cast %109 : vector<16xf32> to vector<16x1xf32>
    %111 = tpu.reciprocal %110 {approx = true} : vector<16x1xf32> -> vector<16x1xf32>
    %112 = vector.broadcast %111 : vector<16x1xf32> to vector<16x16xf32>
    %113 = arith.mulf %108, %112 : vector<16x16xf32>
    %cst_38 = arith.constant dense<0.000000e+00> : vector<16x16xf32>
    %114 = tpu.matmul %113, %102, %cst_38 {dimension_numbers = #tpu.dot_dimension_numbers<[1], [0], [0], [1], [0, 0, 1, 1], [], []>} : vector<16x16xf32>, vector<16x16xf32>, vector<16x16xf32> -> vector<16x16xf32>
    %c0_39 = arith.constant 0 : index
    %c96 = arith.constant 96 : index
    %115 = vector.load %arg6[%c0_39, %c96] : memref<16x128xf32, #tpu.memory_space<vmem>>, vector<16x16xf32>
    tpu.vector_store %arg6[%c0_39, %c96], %114 {strides = array<i32>} : memref<16x128xf32, #tpu.memory_space<vmem>>, vector<16x16xf32>,
    %116 = vector.extract_strided_slice %3 {offsets = [0, 112], sizes = [16, 16], strides = [1, 1]} : vector<16x384xf32> to vector<16x16xf32>
    %117 = vector.extract_strided_slice %3 {offsets = [0, 240], sizes = [16, 16], strides = [1, 1]} : vector<16x384xf32> to vector<16x16xf32>
    %118 = vector.extract_strided_slice %3 {offsets = [0, 368], sizes = [16, 16], strides = [1, 1]} : vector<16x384xf32> to vector<16x16xf32>
    %cst_40 = arith.constant dense<0.000000e+00> : vector<16x16xf32>
    %119 = tpu.matmul %116, %117, %cst_40 {dimension_numbers = #tpu.dot_dimension_numbers<[1], [1], [0], [0], [0, 0, 1, 0], [], []>} : vector<16x16xf32>, vector<16x16xf32>, vector<16x16xf32> -> vector<16x16xf32>
    %cst_41 = arith.constant dense<0xFF800000> : vector<16xf32>
    %120 = vector.multi_reduction <maximumf>, %119, %cst_41 [1] : vector<16x16xf32> to vector<16xf32>
    %121 = vector.shape_cast %120 : vector<16xf32> to vector<16x1xf32>
    %122 = vector.broadcast %121 : vector<16x1xf32> to vector<16x16xf32>
    %123 = arith.subf %119, %122 : vector<16x16xf32>
    %124 = math.exp %123 : vector<16x16xf32>
    %cst_42 = arith.constant dense<0.000000e+00> : vector<16xf32>
    %125 = vector.multi_reduction <add>, %124, %cst_42 [1] : vector<16x16xf32> to vector<16xf32>
    %126 = vector.shape_cast %125 : vector<16xf32> to vector<16x1xf32>
    %127 = tpu.reciprocal %126 {approx = true} : vector<16x1xf32> -> vector<16x1xf32>
    %128 = vector.broadcast %127 : vector<16x1xf32> to vector<16x16xf32>
    %129 = arith.mulf %124, %128 : vector<16x16xf32>
    %cst_43 = arith.constant dense<0.000000e+00> : vector<16x16xf32>
    %130 = tpu.matmul %129, %118, %cst_43 {dimension_numbers = #tpu.dot_dimension_numbers<[1], [0], [0], [1], [0, 0, 1, 1], [], []>} : vector<16x16xf32>, vector<16x16xf32>, vector<16x16xf32> -> vector<16x16xf32>
    %c0_44 = arith.constant 0 : index
    %c112 = arith.constant 112 : index
    %131 = vector.load %arg6[%c0_44, %c112] : memref<16x128xf32, #tpu.memory_space<vmem>>, vector<16x16xf32>
    tpu.vector_store %arg6[%c0_44, %c112], %130 {strides = array<i32>} : memref<16x128xf32, #tpu.memory_space<vmem>>, vector<16x16xf32>,
    %c0_45 = arith.constant 0 : index
    %c0_46 = arith.constant 0 : index
    %132 = vector.load %arg6[%c0_45, %c0_46] : memref<16x128xf32, #tpu.memory_space<vmem>>, vector<16x128xf32>
    %c0_47 = arith.constant 0 : index
    %c0_48 = arith.constant 0 : index
    %133 = vector.load %arg3[%c0_47, %c0_48] : memref<128x128xf32, #tpu.memory_space<vmem>>, vector<128x128xf32>
    %cst_49 = arith.constant dense<0.000000e+00> : vector<16x128xf32>
    %134 = tpu.matmul %132, %133, %cst_49 {dimension_numbers = #tpu.dot_dimension_numbers<[1], [0], [0], [1], [0, 0, 1, 1], [], []>} : vector<16x128xf32>, vector<128x128xf32>, vector<16x128xf32> -> vector<16x128xf32>
    %c0_50 = arith.constant 0 : index
    %c0_51 = arith.constant 0 : index
    %135 = vector.load %arg4[%c0_50, %c0_51] : memref<1x128xf32, #tpu.memory_space<vmem>>, vector<1x128xf32>
    %136 = vector.broadcast %135 : vector<1x128xf32> to vector<16x128xf32>
    %137 = arith.addf %134, %136 : vector<16x128xf32>
    %c0_52 = arith.constant 0 : index
    %c0_53 = arith.constant 0 : index
    %c0_54 = arith.constant 0 : index
    %138 = vector.load %arg5[%c0_52, %c0_53, %c0_54] : memref<1x16x128xf32, #tpu.memory_space<vmem>>, vector<1x16x128xf32>
    %139 = vector.shape_cast %138 : vector<1x16x128xf32> to vector<16x128xf32>
    %140 = vector.shape_cast %137 : vector<16x128xf32> to vector<1x16x128xf32>
    tpu.vector_store %arg5[%c0_52, %c0_53, %c0_54], %140 {strides = array<i32>} : memref<1x16x128xf32, #tpu.memory_space<vmem>>, vector<1x16x128xf32>,
    return
  }
  func.func @transform_0(%arg0: i32) -> (i32, i32, i32) {
    %c0_i32 = arith.constant 0 : i32
    %c0_i32_0 = arith.constant 0 : i32
    %c0_i32_1 = arith.constant 0 : i32
    return %arg0, %c0_i32, %c0_i32_0 : i32, i32, i32
  }
  func.func @transform_1(%arg0: i32) -> (i32, i32) {
    %c0_i32 = arith.constant 0 : i32
    %c0_i32_0 = arith.constant 0 : i32
    %c0_i32_1 = arith.constant 0 : i32
    return %c0_i32, %c0_i32_0 : i32, i32
  }
  func.func @transform_2(%arg0: i32) -> (i32, i32) {
    %c0_i32 = arith.constant 0 : i32
    %c0_i32_0 = arith.constant 0 : i32
    %c0_i32_1 = arith.constant 0 : i32
    return %c0_i32, %c0_i32_0 : i32, i32
  }
  func.func @transform_3(%arg0: i32) -> (i32, i32) {
    %c0_i32 = arith.constant 0 : i32
    %c0_i32_0 = arith.constant 0 : i32
    %c0_i32_1 = arith.constant 0 : i32
    return %c0_i32, %c0_i32_0 : i32, i32
  }
  func.func @transform_4(%arg0: i32) -> (i32, i32, i32) {
    %c0_i32 = arith.constant 0 : i32
    %c0_i32_0 = arith.constant 0 : i32
    %c0_i32_1 = arith.constant 0 : i32
    return %arg0, %c0_i32, %c0_i32_0 : i32, i32, i32
  }
}

</mosaic_0001>

<llo_original>
// kernel: tpu_custom_call.1
$region0: #{tpu_custom_call.1}
  #allocation0 [shape = 'u32[]', space=smem, size = 0x4, offset = 0x4, fixed_abs, tag = 'smem constant byte address 0x4 - core index']
  #allocation1 [shape = 'u32[144,128]{1,0:T(1,128)}', space=vmem, size = 0x12000, scoped, tag = 'internal scratch']
  #allocation2 [shape = 'f32[16,128]{1,0:T(8,128)}', space=vmem, size = 0x2000, scoped, tag = 'scratch operand']
  %s0 = inlined_call_operand.hbm [shape: f32[2,16,128], index: 0, kind: input, shape index: {}]
  %s1 = inlined_call_operand.hbm [shape: f32[128,384], index: 1, kind: input, shape index: {}]
  %s2 = inlined_call_operand.hbm [shape: f32[128,128], index: 2, kind: input, shape index: {}]
  %s3 = inlined_call_operand.vmem [shape: f32[1,128], index: 3, kind: input, shape index: {}]
  %s4 = inlined_call_operand.hbm [shape: f32[2,16,128], index: 4, kind: output, shape index: {}]
  %s5 = sld [smem:[#allocation0]]
  $region61: #{tpu_custom_call.1} parent=0
    _
  %s7 = ssub.s32 1, %s5
  %s8 = scalar_select 0, %s7, %s5
  $region1: #{tpu_custom_call.1} parent=0
    #allocation3 [shape = 'u8[16384]{0}', space=vmem, size = 0x4000, scoped, tag = 'input window, operand 0']
    #allocation4 [shape = 's32[2]{0}', space=sflag, size = 0x8, scoped, tag = 'scoped memory for tpu_custom_call.1']
    #allocation5 [shape = 's32[2]{0}', space=sflag, size = 0x8, scoped, tag = 'scoped memory for tpu_custom_call.1']
    #allocation6 [shape = 'u8[196608]{0}', space=vmem, size = 0x30000, scoped, tag = 'input window, operand 1, single buffered']
    #allocation7 [shape = 's32[1]{0}', space=sflag, size = 0x4, scoped, tag = 'scoped memory for tpu_custom_call.1']
    #allocation8 [shape = 'u8[65536]{0}', space=vmem, size = 0x10000, scoped, tag = 'input window, operand 2, single buffered']
    #allocation9 [shape = 'u8[16384]{0}', space=vmem, size = 0x4000, scoped, tag = 'output window, operand 0']
    %9 = vsyncpa [#allocation4], 0
    %s10 = scalar_lea.sflag [#allocation4], 1
    %11 = vsyncpa %s10, 0
    %12 = vsyncpa [#allocation7], 0
    %13 = vsyncpa [#allocation5], 0
    %s14 = scalar_lea.sflag [#allocation5], 1
    %15 = vsyncpa %s14, 0
    loop: start=0, step=1, limit=4
    $region2: #{tpu_custom_call.1} parent=1 // loop_pre_header
      _
    $region3: #{tpu_custom_call.1} parent=1 // loop_header
      %s17 = sphi 0, %s21
      %p18 = scmp.ge.s32.totalorder %s17, 4
      %s27 = sphi 0, %s29
      %s30 = sphi 0, %s27
      %s31 = sphi 0, %s30
      %s47 = sphi 0, %s31
      %s51 = sphi 0, %s51
      %s53 = sphi 0, %s51
      %s54 = sphi 0, %s53
      %s68 = sphi 0, %s54
      %s72 = sphi 0, %s72
      %s74 = sphi 0, %s72
      %s75 = sphi 0, %s74
      %s89 = sphi 0, %s75
      %s93 = sphi 0, %s93
      %s95 = sphi 0, %s93
      %s96 = sphi 0, %s95
      %s110 = sphi 0, %s96
      %s116 = sphi 0, %s118
      %s119 = sphi 0, %s116
      %s120 = sphi 0, %s119
      %s136 = sphi 0, %s120
    $region4: #{tpu_custom_call.1} parent=1 // loop_header_branch
      %20 = sbr.rel (%p18) target = $region8
    $region5: #{tpu_custom_call.1} parent=1 // loop_body
      %s22 = ssub.s32 %s17, 1
      %s23 = ssub.s32 %s17, 2
      %s24 = sadd.s32 %s17, 1
      %s25 = ssub.s32 %s17, %s24
      %p26 = scmp.eq.s32.totalorder %s25, 0
      %s28 = sadd.s32 %s27, 1
      %s29 = scalar_select %p26, %s27, %s28
      %p32 = pneg %p26
      %p33 = scmp.eq.s32.totalorder %s17, 1
      %p34 = por %p32, %p33
      %p35 = scmp.ne.s32.totalorder %s27, %s30
      %p36 = scmp.eq.s32.totalorder %s17, 0
      %p37 = por %p35, %p36
      %p38 = scmp.ne.s32.totalorder %s27, %s30
      %p39 = scmp.eq.s32.totalorder %s22, 1
      %p40 = por %p38, %p39
      %p41 = scmp.ne.s32.totalorder %s30, %s31
      %p42 = scmp.eq.s32.totalorder %s22, 0
      %p43 = por %p41, %p42
      %p44 = scmp.ne.s32.totalorder %s30, %s31
      %p45 = scmp.eq.s32.totalorder %s23, 1
      %p46 = por %p44, %p45
      %p48 = scmp.ne.s32.totalorder %s31, %s47
      %p49 = scmp.eq.s32.totalorder %s23, 0
      %p50 = por %p48, %p49
      %s52 = sadd.s32 %s51, 1
      %p55 = scmp.eq.s32.totalorder %s17, 1
      %p56 = scmp.ne.s32.totalorder %s51, %s53
      %p57 = scmp.eq.s32.totalorder %s17, 0
      %p58 = por %p56, %p57
      %p59 = scmp.ne.s32.totalorder %s51, %s53
      %p60 = scmp.eq.s32.totalorder %s22, 1
      %p61 = por %p59, %p60
      %p62 = scmp.ne.s32.totalorder %s53, %s54
      %p63 = scmp.eq.s32.totalorder %s22, 0
      %p64 = por %p62, %p63
      %p65 = scmp.ne.s32.totalorder %s53, %s54
      %p66 = scmp.eq.s32.totalorder %s23, 1
      %p67 = por %p65, %p66
      %p69 = scmp.ne.s32.totalorder %s54, %s68
      %p70 = scmp.eq.s32.totalorder %s23, 0
      %p71 = por %p69, %p70
      %s73 = sadd.s32 %s72, 1
      %p76 = scmp.eq.s32.totalorder %s17, 1
      %p77 = scmp.ne.s32.totalorder %s72, %s74
      %p78 = scmp.eq.s32.totalorder %s17, 0
      %p79 = por %p77, %p78
      %p80 = scmp.ne.s32.totalorder %s72, %s74
      %p81 = scmp.eq.s32.totalorder %s22, 1
      %p82 = por %p80, %p81
      %p83 = scmp.ne.s32.totalorder %s74, %s75
      %p84 = scmp.eq.s32.totalorder %s22, 0
      %p85 = por %p83, %p84
      %p86 = scmp.ne.s32.totalorder %s74, %s75
      %p87 = scmp.eq.s32.totalorder %s23, 1
      %p88 = por %p86, %p87
      %p90 = scmp.ne.s32.totalorder %s75, %s89
      %p91 = scmp.eq.s32.totalorder %s23, 0
      %p92 = por %p90, %p91
      %s94 = sadd.s32 %s93, 1
      %p97 = scmp.eq.s32.totalorder %s17, 1
      %p98 = scmp.ne.s32.totalorder %s93, %s95
      %p99 = scmp.eq.s32.totalorder %s17, 0
      %p100 = por %p98, %p99
      %p101 = scmp.ne.s32.totalorder %s93, %s95
      %p102 = scmp.eq.s32.totalorder %s22, 1
      %p103 = por %p101, %p102
      %p104 = scmp.ne.s32.totalorder %s95, %s96
      %p105 = scmp.eq.s32.totalorder %s22, 0
      %p106 = por %p104, %p105
      %p107 = scmp.ne.s32.totalorder %s95, %s96
      %p108 = scmp.eq.s32.totalorder %s23, 1
      %p109 = por %p107, %p108
      %p111 = scmp.ne.s32.totalorder %s96, %s110
      %p112 = scmp.eq.s32.totalorder %s23, 0
      %p113 = por %p111, %p112
      %s114 = ssub.s32 %s17, %s24
      %p115 = scmp.eq.s32.totalorder %s114, 0
      %s117 = sadd.s32 %s116, 1
      %s118 = scalar_select %p115, %s116, %s117
      %p121 = pneg %p115
      %p122 = scmp.eq.s32.totalorder %s17, 1
      %p123 = por %p121, %p122
      %p124 = scmp.ne.s32.totalorder %s116, %s119
      %p125 = scmp.eq.s32.totalorder %s17, 0
      %p126 = por %p124, %p125
      %p127 = scmp.ne.s32.totalorder %s116, %s119
      %p128 = scmp.eq.s32.totalorder %s22, 1
      %p129 = por %p127, %p128
      %p130 = scmp.ne.s32.totalorder %s119, %s120
      %p131 = scmp.eq.s32.totalorder %s22, 0
      %p132 = por %p130, %p131
      %p133 = scmp.ne.s32.totalorder %s119, %s120
      %p134 = scmp.eq.s32.totalorder %s23, 1
      %p135 = por %p133, %p134
      %p137 = scmp.ne.s32.totalorder %s120, %s136
      %p138 = scmp.eq.s32.totalorder %s23, 0
      %p139 = por %p137, %p138
      %p140 = scmp.le.s32.totalorder 1, %s17
      %p141 = scmp.lt.s32.totalorder %s17, 3
      %p142 = pnand %p140, %p141
      %p143 = pneg %p142
      // Predicated region
      $region9: #{tpu_custom_call.1} parent=5 // pred_check
        _
      $region10: #{tpu_custom_call.1} parent=5 // pred_check_branch
        %145 = sbr.rel (%p142) target = $region12
      $region11: #{tpu_custom_call.1} parent=5 // pred_region
        %s146 = ssub.s32 %s17, 1
        // Predicated region
        $region13: #{tpu_custom_call.1} parent=11 // pred_check
          %p147 = pneg %p64
        $region14: #{tpu_custom_call.1} parent=11 // pred_check_branch
          %149 = sbr.rel (%p147) target = $region16
        $region15: #{tpu_custom_call.1} parent=11 // pred_region
          %s151 = ssub.s32 6144, 6144
          %152 = vsyncadd [#allocation7], %s151
          %s153 = sshll.u32 [#allocation6], 4
          %s154 = int_to_ptr.vmem [resolvable:$true] %s153
          %159 = dma.hbm_to_vmem [thread:$0]  %s1, 6144, %s154, [#allocation7], 384, 384, 24
        $region16: #{tpu_custom_call.1} parent=11 // pred_fallthru
          _
        // Predicated region
        $region17: #{tpu_custom_call.1} parent=11 // pred_check
          %p160 = pneg %p85
        $region18: #{tpu_custom_call.1} parent=11 // pred_check_branch
          %162 = sbr.rel (%p160) target = $region20
        $region19: #{tpu_custom_call.1} parent=11 // pred_region
          %s164 = ssub.s32 2048, 2048
          %165 = vsyncadd [#allocation7], %s164
          %s166 = sshll.u32 [#allocation8], 4
          %s167 = int_to_ptr.vmem [resolvable:$true] %s166
          %172 = dma.hbm_to_vmem [thread:$0]  %s2, 2048, %s167, [#allocation7], 128, 128, 8
        $region20: #{tpu_custom_call.1} parent=11 // pred_fallthru
          _
        // Predicated region
        $region21: #{tpu_custom_call.1} parent=11 // pred_check
          %p173 = pneg %p106
        $region22: #{tpu_custom_call.1} parent=11 // pred_check_branch
          %175 = sbr.rel (%p173) target = $region24
        $region23: #{tpu_custom_call.1} parent=11 // pred_region
          _
        $region24: #{tpu_custom_call.1} parent=11 // pred_fallthru
          _
      $region12: #{tpu_custom_call.1} parent=5 // pred_fallthru
        _
      %p176 = scmp.lt.s32.totalorder %s17, 2
      // Predicated region
      $region25: #{tpu_custom_call.1} parent=5 // pred_check
        %p177 = pneg %p176
      $region26: #{tpu_custom_call.1} parent=5 // pred_check_branch
        %179 = sbr.rel (%p177) target = $region28
      $region27: #{tpu_custom_call.1} parent=5 // pred_region
        // Predicated region
        $region29: #{tpu_custom_call.1} parent=27 // pred_check
          %p180 = pneg %p37
        $region30: #{tpu_custom_call.1} parent=27 // pred_check_branch
          %182 = sbr.rel (%p180) target = $region32
        $region31: #{tpu_custom_call.1} parent=27 // pred_region
          %s183 = sand.u32 %s27, 1
          %s184 = scalar_lea.sflag [#allocation4], %s183
          %s185 = sand.u32 %s27, 1
          %s186 = smul.addr %s185, 16
          %s187 = scalar_lea.vmem [#allocation3], %s186
          %s189 = ssub.s32 256, 256
          %190 = vsyncadd %s184, %s189
          %s191 = smul.addr %s17, 2
          %s192 = smul.addr %s191, 128
          %s193 = scalar_lea.hbm %s0, %s192
          %s194 = sshll.u32 %s187, 4
          %s195 = int_to_ptr.vmem [resolvable:$true] %s194
          %200 = dma.hbm_to_vmem [thread:$0]  %s193, 256, %s195, %s184, 128, 128, 8
        $region32: #{tpu_custom_call.1} parent=27 // pred_fallthru
          _
      $region28: #{tpu_custom_call.1} parent=5 // pred_fallthru
        _
      %p201 = scmp.le.s32.totalorder 1, %s17
      %p202 = scmp.lt.s32.totalorder %s17, 3
      %p203 = pnand %p201, %p202
      %p204 = pneg %p203
      // Predicated region
      $region33: #{tpu_custom_call.1} parent=5 // pred_check
        _
      $region34: #{tpu_custom_call.1} parent=5 // pred_check_branch
        %206 = sbr.rel (%p203) target = $region36
      $region35: #{tpu_custom_call.1} parent=5 // pred_region
        %s207 = ssub.s32 %s17, 1
        %s208 = sand.u32 %s30, 1
        %s209 = scalar_lea.sflag [#allocation4], %s208
        %s210 = sand.u32 %s30, 1
        %s211 = smul.addr %s210, 16
        %s212 = scalar_lea.vmem [#allocation3], %s211
        // Predicated region
        $region37: #{tpu_custom_call.1} parent=35 // pred_check
          %p213 = pneg %p43
        $region38: #{tpu_custom_call.1} parent=35 // pred_check_branch
          %215 = sbr.rel (%p213) target = $region40
        $region39: #{tpu_custom_call.1} parent=35 // pred_region
          %216 = dma.done %s209, 256
        $region40: #{tpu_custom_call.1} parent=35 // pred_fallthru
          _
        // Predicated region
        $region41: #{tpu_custom_call.1} parent=35 // pred_check
          %p217 = pneg %p64
        $region42: #{tpu_custom_call.1} parent=35 // pred_check_branch
          %219 = sbr.rel (%p217) target = $region44
        $region43: #{tpu_custom_call.1} parent=35 // pred_region
          %220 = dma.done [#allocation7], 6144
        $region44: #{tpu_custom_call.1} parent=35 // pred_fallthru
          _
        // Predicated region
        $region45: #{tpu_custom_call.1} parent=35 // pred_check
          %p221 = pneg %p85
        $region46: #{tpu_custom_call.1} parent=35 // pred_check_branch
          %223 = sbr.rel (%p221) target = $region48
        $region47: #{tpu_custom_call.1} parent=35 // pred_region
          %224 = dma.done [#allocation7], 2048
        $region48: #{tpu_custom_call.1} parent=35 // pred_fallthru
          _
        %s225 = sand.u32 %s30, 1
        %s226 = scalar_lea.sflag [#allocation4], %s225
        %s227 = sand.u32 %s30, 1
        %s228 = smul.addr %s227, 16
        %s229 = scalar_lea.vmem [#allocation3], %s228
        %p230 = pneg %p43
        %p231 = pneg %p40
        %p232 = pneg %p64
        %p233 = pneg %p61
        %p234 = pneg %p85
        %p235 = pneg %p82
        %p236 = pneg %p106
        %p237 = pneg %p103
        %p238 = pneg %p132
        %p239 = pneg %p129
        %s240 = sand.u32 %s119, 1
        %s241 = scalar_lea.sflag [#allocation5], %s240
        %s242 = sand.u32 %s119, 1
        %s243 = smul.addr %s242, 16
        %s244 = scalar_lea.vmem [#allocation9], %s243
        %v245 = vld [vmem:[%s212] sm:$0xff]
        %v246 = vld [vmem:[%s212 + $0x8] sm:$0xff]
        %v247 = vld [vmem:[#allocation6] sm:$0xff]
        %v248 = vld [vmem:[#allocation6 + $0x8] sm:$0xff]
        %v249 = vld [vmem:[#allocation6 + $0x10] sm:$0xff]
        %v250 = vld [vmem:[#allocation6 + $0x18] sm:$0xff]
        %v251 = vld [vmem:[#allocation6 + $0x20] sm:$0xff]
        %v252 = vld [vmem:[#allocation6 + $0x28] sm:$0xff]
        %v253 = vld [vmem:[#allocation6 + $0x30] sm:$0xff]
        %v254 = vld [vmem:[#allocation6 + $0x38] sm:$0xff]
        %v255 = vld [vmem:[#allocation6 + $0x40] sm:$0xff]
        %v256 = vld [vmem:[#allocation6 + $0x48] sm:$0xff]
        %v257 = vld [vmem:[#allocation6 + $0x50] sm:$0xff]
        %v258 = vld [vmem:[#allocation6 + $0x58] sm:$0xff]
        %v259 = vld [vmem:[#allocation6 + $0x60] sm:$0xff]
        %v260 = vld [vmem:[#allocation6 + $0x68] sm:$0xff]
        %v261 = vld [vmem:[#allocation6 + $0x70] sm:$0xff]
        %v262 = vld [vmem:[#allocation6 + $0x78] sm:$0xff]
        %v263 = vld [vmem:[#allocation6 + $0x80] sm:$0xff]
        %v264 = vld [vmem:[#allocation6 + $0x88] sm:$0xff]
        %v265 = vld [vmem:[#allocation6 + $0x90] sm:$0xff]
        %v266 = vld [vmem:[#allocation6 + $0x98] sm:$0xff]
        %v267 = vld [vmem:[#allocation6 + $0xa0] sm:$0xff]
        %v268 = vld [vmem:[#allocation6 + $0xa8] sm:$0xff]
        %v269 = vld [vmem:[#allocation6 + $0xb0] sm:$0xff]
        %v270 = vld [vmem:[#allocation6 + $0xb8] sm:$0xff]
        %v271 = vld [vmem:[#allocation6 + $0xc0] sm:$0xff]
        %v272 = vld [vmem:[#allocation6 + $0xc8] sm:$0xff]
        %v273 = vld [vmem:[#allocation6 + $0xd0] sm:$0xff]
        %v274 = vld [vmem:[#allocation6 + $0xd8] sm:$0xff]
        %v275 = vld [vmem:[#allocation6 + $0xe0] sm:$0xff]
        %v276 = vld [vmem:[#allocation6 + $0xe8] sm:$0xff]
        %v277 = vld [vmem:[#allocation6 + $0xf0] sm:$0xff]
        %v278 = vld [vmem:[#allocation6 + $0xf8] sm:$0xff]
        %v279 = vld [vmem:[#allocation6 + $0x100] sm:$0xff]
        %v280 = vld [vmem:[#allocation6 + $0x108] sm:$0xff]
        %v281 = vld [vmem:[#allocation6 + $0x110] sm:$0xff]
        %v282 = vld [vmem:[#allocation6 + $0x118] sm:$0xff]
        %v283 = vld [vmem:[#allocation6 + $0x120] sm:$0xff]
        %v284 = vld [vmem:[#allocation6 + $0x128] sm:$0xff]
        %v285 = vld [vmem:[#allocation6 + $0x130] sm:$0xff]
        %v286 = vld [vmem:[#allocation6 + $0x138] sm:$0xff]
        %v287 = vld [vmem:[#allocation6 + $0x140] sm:$0xff]
        %v288 = vld [vmem:[#allocation6 + $0x148] sm:$0xff]
        %v289 = vld [vmem:[#allocation6 + $0x150] sm:$0xff]
        %v290 = vld [vmem:[#allocation6 + $0x158] sm:$0xff]
        %v291 = vld [vmem:[#allocation6 + $0x160] sm:$0xff]
        %v292 = vld [vmem:[#allocation6 + $0x168] sm:$0xff]
        %v293 = vld [vmem:[#allocation6 + $0x170] sm:$0xff]
        %v294 = vld [vmem:[#allocation6 + $0x178] sm:$0xff]
        %295 = vmatprep.subr.mxu0 %v248
        %296 = vmatpush1.msra.mxu0 %v247
        %297 = vmatprep.subr.mxu0 %v251
        %298 = vmatpush1.msra.mxu0 %v250
        %299 = vmatprep.subr.mxu0 %v254
        %300 = vmatpush1.msra.mxu0 %v253
        %301 = vmatprep.subr.mxu0 %v257
        %302 = vmatpush1.msra.mxu0 %v256
        %303 = vmatprep.subr.mxu0 %v260
        %304 = vmatpush1.msra.mxu0 %v259
        %305 = vmatprep.subr.mxu0 %v263
        %306 = vmatpush1.msra.mxu0 %v262
        %307 = vmatprep.subr.mxu0 %v266
        %308 = vmatpush1.msra.mxu0 %v265
        %309 = vmatprep.subr.mxu0 %v269
        %310 = vmatpush1.msra.mxu0 %v268
        %311 = vmatprep.subr.mxu0 %v272
        %312 = vmatpush1.msra.mxu0 %v271
        %313 = vmatprep.subr.mxu0 %v275
        %314 = vmatpush1.msra.mxu0 %v274
        %315 = vmatprep.subr.mxu0 %v278
        %316 = vmatpush1.msra.mxu0 %v277
        %317 = vmatprep.subr.mxu0 %v281
        %318 = vmatpush1.msra.mxu0 %v280
        %319 = vmatprep.subr.mxu0 %v284
        %320 = vmatpush1.msra.mxu0 %v283
        %321 = vmatprep.subr.mxu0 %v287
        %322 = vmatpush1.msra.mxu0 %v286
        %323 = vmatprep.subr.mxu0 %v290
        %324 = vmatpush1.msra.mxu0 %v289
        %325 = vmatprep.subr.mxu0 %v293
        %326 = vmatpush1.msra.mxu0 %v292
        %327 = vmatprep.subr.mxu0 0.0
        %328 = vmatpush1.msra.mxu0 0.0
        %329 = vmatprep.subr.mxu0 0.0
        %330 = vmatpush1.msra.mxu0 0.0
        %331 = vmatprep.subr.mxu0 0.0
        %332 = vmatpush1.msra.mxu0 0.0
        %333 = vmatprep.subr.mxu0 0.0
        %334 = vmatpush1.msra.mxu0 0.0
        %335 = vmatprep.subr.mxu0 0.0
        %336 = vmatpush1.msra.mxu0 0.0
        %337 = vmatprep.subr.mxu0 0.0
        %338 = vmatpush1.msra.mxu0 0.0
        %339 = vmatprep.subr.mxu0 0.0
        %340 = vmatpush1.msra.mxu0 0.0
        %341 = vmatprep.subr.mxu0 0.0
        %342 = vmatpush1.msra.mxu0 0.0
        %343 = vmatprep.subr.mxu0 0.0
        %344 = vmatpush1.msra.mxu0 0.0
        %345 = vmatprep.subr.mxu0 0.0
        %346 = vmatpush1.msra.mxu0 0.0
        %347 = vmatprep.subr.mxu0 0.0
        %348 = vmatpush1.msra.mxu0 0.0
        %349 = vmatprep.subr.mxu0 0.0
        %350 = vmatpush1.msra.mxu0 0.0
        %351 = vmatprep.subr.mxu0 0.0
        %352 = vmatpush1.msra.mxu0 0.0
        %353 = vmatprep.subr.mxu0 0.0
        %354 = vmatpush1.msra.mxu0 0.0
        %355 = vmatprep.subr.mxu0 0.0
        %356 = vmatpush1.msra.mxu0 0.0
        %357 = vmatprep.subr.mxu0 0.0
        %358 = vmatpush1.msra.mxu0 0.0
        %359 = vmatprep.mubr.f32.mxu0 0.0
        %360 = vmatmul.mubr.f32.gmra.mrb[0].mxu0 %v245
        %v361 = vpop.f32.mrb[0].mxu0
        %v362 = vadd.f32 0.0, %v361
        %v363 = vpop.f32.mrb[0].mxu0
        %v364 = vadd.f32 0.0, %v363
        %365 = vmatprep.mubr.f32.mxu0 0.0
        %366 = vmatmul.mubr.f32.gmra.mrb[0].mxu0 %v246
        %v367 = vpop.f32.mrb[0].mxu0
        %v368 = vadd.f32 0.0, %v367
        %v369 = vpop.f32.mrb[0].mxu0
        %v370 = vadd.f32 0.0, %v369
        %371 = vdwg.mxu0
        %372 = vmatprep.subr.mxu0 0.0
        %373 = vmatpush1.msra.mxu0 %v249
        %374 = vmatprep.subr.mxu0 0.0
        %375 = vmatpush1.msra.mxu0 %v252
        %376 = vmatprep.subr.mxu0 0.0
        %377 = vmatpush1.msra.mxu0 %v255
        %378 = vmatprep.subr.mxu0 0.0
        %379 = vmatpush1.msra.mxu0 %v258
        %380 = vmatprep.subr.mxu0 0.0
        %381 = vmatpush1.msra.mxu0 %v261
        %382 = vmatprep.subr.mxu0 0.0
        %383 = vmatpush1.msra.mxu0 %v264
        %384 = vmatprep.subr.mxu0 0.0
        %385 = vmatpush1.msra.mxu0 %v267
        %386 = vmatprep.subr.mxu0 0.0
        %387 = vmatpush1.msra.mxu0 %v270
        %388 = vmatprep.subr.mxu0 0.0
        %389 = vmatpush1.msra.mxu0 %v273
        %390 = vmatprep.subr.mxu0 0.0
        %391 = vmatpush1.msra.mxu0 %v276
        %392 = vmatprep.subr.mxu0 0.0
        %393 = vmatpush1.msra.mxu0 %v279
        %394 = vmatprep.subr.mxu0 0.0
        %395 = vmatpush1.msra.mxu0 %v282
        %396 = vmatprep.subr.mxu0 0.0
        %397 = vmatpush1.msra.mxu0 %v285
        %398 = vmatprep.subr.mxu0 0.0
        %399 = vmatpush1.msra.mxu0 %v288
        %400 = vmatprep.subr.mxu0 0.0
        %401 = vmatpush1.msra.mxu0 %v291
        %402 = vmatprep.subr.mxu0 0.0
        %403 = vmatpush1.msra.mxu0 %v294
        %404 = vmatprep.subr.mxu0 0.0
        %405 = vmatpush1.msra.mxu0 0.0
        %406 = vmatprep.subr.mxu0 0.0
        %407 = vmatpush1.msra.mxu0 0.0
        %408 = vmatprep.subr.mxu0 0.0
        %409 = vmatpush1.msra.mxu0 0.0
        %410 = vmatprep.subr.mxu0 0.0
        %411 = vmatpush1.msra.mxu0 0.0
        %412 = vmatprep.subr.mxu0 0.0
        %413 = vmatpush1.msra.mxu0 0.0
        %414 = vmatprep.subr.mxu0 0.0
        %415 = vmatpush1.msra.mxu0 0.0
        %416 = vmatprep.subr.mxu0 0.0
        %417 = vmatpush1.msra.mxu0 0.0
        %418 = vmatprep.subr.mxu0 0.0
        %419 = vmatpush1.msra.mxu0 0.0
        %420 = vmatprep.subr.mxu0 0.0
        %421 = vmatpush1.msra.mxu0 0.0
        %422 = vmatprep.subr.mxu0 0.0
        %423 = vmatpush1.msra.mxu0 0.0
        %424 = vmatprep.subr.mxu0 0.0
        %425 = vmatpush1.msra.mxu0 0.0
        %426 = vmatprep.subr.mxu0 0.0
        %427 = vmatpush1.msra.mxu0 0.0
        %428 = vmatprep.subr.mxu0 0.0
        %429 = vmatpush1.msra.mxu0 0.0
        %430 = vmatprep.subr.mxu0 0.0
        %431 = vmatpush1.msra.mxu0 0.0
        %432 = vmatprep.subr.mxu0 0.0
        %433 = vmatpush1.msra.mxu0 0.0
        %434 = vmatprep.subr.mxu0 0.0
        %435 = vmatpush1.msra.mxu0 0.0
        %436 = vmatprep.mubr.f32.mxu0 0.0
        %437 = vmatmul.mubr.f32.gmra.mrb[0].mxu0 %v245
        %v438 = vpop.f32.mrb[0].mxu0
        %v439 = vadd.f32 0.0, %v438
        %v440 = vpop.f32.mrb[0].mxu0
        %441 = vmatprep.mubr.f32.mxu0 0.0
        %442 = vmatmul.mubr.f32.gmra.mrb[0].mxu0 %v246
        %v443 = vpop.f32.mrb[0].mxu0
        %v444 = vadd.f32 0.0, %v443
        %v445 = vpop.f32.mrb[0].mxu0
        %446 = vdwg.mxu0
        %vm447 = vcmask 130048
        %v449 = vsel %vm447, %v362, 0
        %v452 = vsel %vm447, %v368, 0
        %v455 = vsel %vm447, %v364, 0
        %v458 = vsel %vm447, %v370, 0
        %460 = vmatprep.subr.mxu0 0.0
        %461 = vmatpush1.xpose.msra.mxu0 %v455
        %462 = vmatprep.subr.mxu0 0.0
        %463 = vmatpush1.xpose.msra.mxu0 %v458
        %464 = vmatprep.subr.mxu0 0.0
        %465 = vmatpush1.xpose.msra.mxu0 0.0
        %466 = vmatprep.subr.mxu0 0.0
        %467 = vmatpush1.xpose.msra.mxu0 0.0
        %468 = vmatprep.subr.mxu0 0.0
        %469 = vmatpush1.xpose.msra.mxu0 0.0
        %470 = vmatprep.subr.mxu0 0.0
        %471 = vmatpush1.xpose.msra.mxu0 0.0
        %472 = vmatprep.subr.mxu0 0.0
        %473 = vmatpush1.xpose.msra.mxu0 0.0
        %474 = vmatprep.subr.mxu0 0.0
        %475 = vmatpush1.xpose.msra.mxu0 0.0
        %476 = vmatprep.subr.mxu0 0.0
        %477 = vmatpush1.xpose.msra.mxu0 0.0
        %478 = vmatprep.subr.mxu0 0.0
        %479 = vmatpush1.xpose.msra.mxu0 0.0
        %480 = vmatprep.subr.mxu0 0.0
        %481 = vmatpush1.xpose.msra.mxu0 0.0
        %482 = vmatprep.subr.mxu0 0.0
        %483 = vmatpush1.xpose.msra.mxu0 0.0
        %484 = vmatprep.subr.mxu0 0.0
        %485 = vmatpush1.xpose.msra.mxu0 0.0
        %486 = vmatprep.subr.mxu0 0.0
        %487 = vmatpush1.xpose.msra.mxu0 0.0
        %488 = vmatprep.subr.mxu0 0.0
        %489 = vmatpush1.xpose.msra.mxu0 0.0
        %490 = vmatprep.subr.mxu0 0.0
        %491 = vmatpush1.xpose.msra.mxu0 0.0
        %492 = vmatprep.subr.mxu0 0.0
        %493 = vmatpush1.xpose.msra.mxu0 0.0
        %494 = vmatprep.subr.mxu0 0.0
        %495 = vmatpush1.xpose.msra.mxu0 0.0
        %496 = vmatprep.subr.mxu0 0.0
        %497 = vmatpush1.xpose.msra.mxu0 0.0
        %498 = vmatprep.subr.mxu0 0.0
        %499 = vmatpush1.xpose.msra.mxu0 0.0
        %500 = vmatprep.subr.mxu0 0.0
        %501 = vmatpush1.xpose.msra.mxu0 0.0
        %502 = vmatprep.subr.mxu0 0.0
        %503 = vmatpush1.xpose.msra.mxu0 0.0
        %504 = vmatprep.subr.mxu0 0.0
        %505 = vmatpush1.xpose.msra.mxu0 0.0
        %506 = vmatprep.subr.mxu0 0.0
        %507 = vmatpush1.xpose.msra.mxu0 0.0
        %508 = vmatprep.subr.mxu0 0.0
        %509 = vmatpush1.xpose.msra.mxu0 0.0
        %510 = vmatprep.subr.mxu0 0.0
        %511 = vmatpush1.xpose.msra.mxu0 0.0
        %512 = vmatprep.subr.mxu0 0.0
        %513 = vmatpush1.xpose.msra.mxu0 0.0
        %514 = vmatprep.subr.mxu0 0.0
        %515 = vmatpush1.xpose.msra.mxu0 0.0
        %516 = vmatprep.subr.mxu0 0.0
        %517 = vmatpush1.xpose.msra.mxu0 0.0
        %518 = vmatprep.subr.mxu0 0.0
        %519 = vmatpush1.xpose.msra.mxu0 0.0
        %520 = vmatprep.subr.mxu0 0.0
        %521 = vmatpush1.xpose.msra.mxu0 0.0
        %522 = vmatprep.subr.mxu0 0.0
        %523 = vmatpush1.xpose.msra.mxu0 0.0
        %524 = vmatprep.mubr.f32.mxu0 0.0
        %525 = vmatmul.mubr.f32.gmra.mrb[0].mxu0 %v449
        %v526 = vpop.f32.mrb[0].mxu0
        %v527 = vadd.f32 0.0, %v526
        %v528 = vpop.f32.mrb[0].mxu0
        %529 = vmatprep.mubr.f32.mxu0 0.0
        %530 = vmatmul.mubr.f32.gmra.mrb[0].mxu0 %v452
        %v531 = vpop.f32.mrb[0].mxu0
        %v532 = vadd.f32 0.0, %v531
        %v533 = vpop.f32.mrb[0].mxu0
        %534 = vdwg.mxu0
        %v535 = vsel %vm447, %v527, -inf
        %536 = vmax.xlane.f32.xlu0 %v535
        %v537 = vpop.xlane.xlu0 %536
        %v538 = vsel %vm447, %v532, -inf
        %539 = vmax.xlane.f32.xlu0 %v538
        %v540 = vpop.xlane.xlu0 %539
        %v541 = vsub.f32 %v527, %v537
        %v542 = vsub.f32 %v532, %v540
        %v543 = vmul.f32 %v541, 1.442695
        %v544 = vpow.pop %v543
        %v545 = vmul.f32 %v542, 1.442695
        %v546 = vpow.pop %v545
        %v547 = vsel %vm447, %v544, 0.0
        %548 = vadd.xlane.f32.xlu0 %v547
        %v549 = vpop.xlane.xlu0 %548
        %v550 = vsel %vm447, %v546, 0.0
        %551 = vadd.xlane.f32.xlu0 %v550
        %v552 = vpop.xlane.xlu0 %551
        %v553 = vrcp.pop %v549
        %v554 = vrcp.pop %v552
        %v555 = vmul.f32 %v544, %v553
        %v556 = vmul.f32 %v546, %v554
        %v558 = vsel %vm447, %v555, 0
        %v561 = vsel %vm447, %v556, 0
        %563 = vmatprep.subr.mxu0 0.0
        %564 = vmatpush1.msra.mxu0 %v439
        %565 = vmatprep.subr.mxu0 0.0
        %566 = vmatpush1.msra.mxu0 %v444
        %567 = vmatprep.subr.mxu0 0.0
        %568 = vmatpush1.msra.mxu0 0.0
        %569 = vmatprep.subr.mxu0 0.0
        %570 = vmatpush1.msra.mxu0 0.0
        %571 = vmatprep.subr.mxu0 0.0
        %572 = vmatpush1.msra.mxu0 0.0
        %573 = vmatprep.subr.mxu0 0.0
        %574 = vmatpush1.msra.mxu0 0.0
        %575 = vmatprep.subr.mxu0 0.0
        %576 = vmatpush1.msra.mxu0 0.0
        %577 = vmatprep.subr.mxu0 0.0
        %578 = vmatpush1.msra.mxu0 0.0
        %579 = vmatprep.subr.mxu0 0.0
        %580 = vmatpush1.msra.mxu0 0.0
        %581 = vmatprep.subr.mxu0 0.0
        %582 = vmatpush1.msra.mxu0 0.0
        %583 = vmatprep.subr.mxu0 0.0
        %584 = vmatpush1.msra.mxu0 0.0
        %585 = vmatprep.subr.mxu0 0.0
        %586 = vmatpush1.msra.mxu0 0.0
        %587 = vmatprep.subr.mxu0 0.0
        %588 = vmatpush1.msra.mxu0 0.0
        %589 = vmatprep.subr.mxu0 0.0
        %590 = vmatpush1.msra.mxu0 0.0
        %591 = vmatprep.subr.mxu0 0.0
        %592 = vmatpush1.msra.mxu0 0.0
        %593 = vmatprep.subr.mxu0 0.0
        %594 = vmatpush1.msra.mxu0 0.0
        %595 = vmatprep.subr.mxu0 0.0
        %596 = vmatpush1.msra.mxu0 0.0
        %597 = vmatprep.subr.mxu0 0.0
        %598 = vmatpush1.msra.mxu0 0.0
        %599 = vmatprep.subr.mxu0 0.0
        %600 = vmatpush1.msra.mxu0 0.0
        %601 = vmatprep.subr.mxu0 0.0
        %602 = vmatpush1.msra.mxu0 0.0
        %603 = vmatprep.subr.mxu0 0.0
        %604 = vmatpush1.msra.mxu0 0.0
        %605 = vmatprep.subr.mxu0 0.0
        %606 = vmatpush1.msra.mxu0 0.0
        %607 = vmatprep.subr.mxu0 0.0
        %608 = vmatpush1.msra.mxu0 0.0
        %609 = vmatprep.subr.mxu0 0.0
        %610 = vmatpush1.msra.mxu0 0.0
        %611 = vmatprep.subr.mxu0 0.0
        %612 = vmatpush1.msra.mxu0 0.0
        %613 = vmatprep.subr.mxu0 0.0
        %614 = vmatpush1.msra.mxu0 0.0
        %615 = vmatprep.subr.mxu0 0.0
        %616 = vmatpush1.msra.mxu0 0.0
        %617 = vmatprep.subr.mxu0 0.0
        %618 = vmatpush1.msra.mxu0 0.0
        %619 = vmatprep.subr.mxu0 0.0
        %620 = vmatpush1.msra.mxu0 0.0
        %621 = vmatprep.subr.mxu0 0.0
        %622 = vmatpush1.msra.mxu0 0.0
        %623 = vmatprep.subr.mxu0 0.0
        %624 = vmatpush1.msra.mxu0 0.0
        %625 = vmatprep.subr.mxu0 0.0
        %626 = vmatpush1.msra.mxu0 0.0
        %627 = vmatprep.mubr.f32.mxu0 0.0
        %628 = vmatmul.mubr.f32.gmra.mrb[0].mxu0 %v558
        %v629 = vpop.f32.mrb[0].mxu0
        %v630 = vadd.f32 0.0, %v629
        %v631 = vpop.f32.mrb[0].mxu0
        %632 = vmatprep.mubr.f32.mxu0 0.0
        %633 = vmatmul.mubr.f32.gmra.mrb[0].mxu0 %v561
        %v634 = vpop.f32.mrb[0].mxu0
        %v635 = vadd.f32 0.0, %v634
        %v636 = vpop.f32.mrb[0].mxu0
        %637 = vdwg.mxu0
        %638 = vst.msk [vmem:[#allocation2] sm:$0xff] %vm447, %v630
        %639 = vst.msk [vmem:[#allocation2 + $0x8] sm:$0xff] %vm447, %v635
        %640 = vrot.lane.b32.xlu0 %v362, 112
        %v641 = vpop.permute.xlu0 %640
        %642 = vrot.lane.b32.xlu0 %v368, 112
        %v643 = vpop.permute.xlu0 %642
        %644 = vrot.lane.b32.xlu0 %v364, 112
        %v645 = vpop.permute.xlu0 %644
        %646 = vrot.lane.b32.xlu0 %v370, 112
        %v647 = vpop.permute.xlu0 %646
        %v648 = vsel %vm447, %v641, 0
        %v650 = vsel %vm447, %v643, 0
        %v652 = vsel %vm447, %v645, 0
        %v654 = vsel %vm447, %v647, 0
        %656 = vmatprep.subr.mxu0 0.0
        %657 = vmatpush1.xpose.msra.mxu0 %v652
        %658 = vmatprep.subr.mxu0 0.0
        %659 = vmatpush1.xpose.msra.mxu0 %v654
        %660 = vmatprep.subr.mxu0 0.0
        %661 = vmatpush1.xpose.msra.mxu0 0.0
        %662 = vmatprep.subr.mxu0 0.0
        %663 = vmatpush1.xpose.msra.mxu0 0.0
        %664 = vmatprep.subr.mxu0 0.0
        %665 = vmatpush1.xpose.msra.mxu0 0.0
        %666 = vmatprep.subr.mxu0 0.0
        %667 = vmatpush1.xpose.msra.mxu0 0.0
        %668 = vmatprep.subr.mxu0 0.0
        %669 = vmatpush1.xpose.msra.mxu0 0.0
        %670 = vmatprep.subr.mxu0 0.0
        %671 = vmatpush1.xpose.msra.mxu0 0.0
        %672 = vmatprep.subr.mxu0 0.0
        %673 = vmatpush1.xpose.msra.mxu0 0.0
        %674 = vmatprep.subr.mxu0 0.0
        %675 = vmatpush1.xpose.msra.mxu0 0.0
        %676 = vmatprep.subr.mxu0 0.0
        %677 = vmatpush1.xpose.msra.mxu0 0.0
        %678 = vmatprep.subr.mxu0 0.0
        %679 = vmatpush1.xpose.msra.mxu0 0.0
        %680 = vmatprep.subr.mxu0 0.0
        %681 = vmatpush1.xpose.msra.mxu0 0.0
        %682 = vmatprep.subr.mxu0 0.0
        %683 = vmatpush1.xpose.msra.mxu0 0.0
        %684 = vmatprep.subr.mxu0 0.0
        %685 = vmatpush1.xpose.msra.mxu0 0.0
        %686 = vmatprep.subr.mxu0 0.0
        %687 = vmatpush1.xpose.msra.mxu0 0.0
        %688 = vmatprep.subr.mxu0 0.0
        %689 = vmatpush1.xpose.msra.mxu0 0.0
        %690 = vmatprep.subr.mxu0 0.0
        %691 = vmatpush1.xpose.msra.mxu0 0.0
        %692 = vmatprep.subr.mxu0 0.0
        %693 = vmatpush1.xpose.msra.mxu0 0.0
        %694 = vmatprep.subr.mxu0 0.0
        %695 = vmatpush1.xpose.msra.mxu0 0.0
        %696 = vmatprep.subr.mxu0 0.0
        %697 = vmatpush1.xpose.msra.mxu0 0.0
        %698 = vmatprep.subr.mxu0 0.0
        %699 = vmatpush1.xpose.msra.mxu0 0.0
        %700 = vmatprep.subr.mxu0 0.0
        %701 = vmatpush1.xpose.msra.mxu0 0.0
        %702 = vmatprep.subr.mxu0 0.0
        %703 = vmatpush1.xpose.msra.mxu0 0.0
        %704 = vmatprep.subr.mxu0 0.0
        %705 = vmatpush1.xpose.msra.mxu0 0.0
        %706 = vmatprep.subr.mxu0 0.0
        %707 = vmatpush1.xpose.msra.mxu0 0.0
        %708 = vmatprep.subr.mxu0 0.0
        %709 = vmatpush1.xpose.msra.mxu0 0.0
        %710 = vmatprep.subr.mxu0 0.0
        %711 = vmatpush1.xpose.msra.mxu0 0.0
        %712 = vmatprep.subr.mxu0 0.0
        %713 = vmatpush1.xpose.msra.mxu0 0.0
        %714 = vmatprep.subr.mxu0 0.0
        %715 = vmatpush1.xpose.msra.mxu0 0.0
        %716 = vmatprep.subr.mxu0 0.0
        %717 = vmatpush1.xpose.msra.mxu0 0.0
        %718 = vmatprep.subr.mxu0 0.0
        %719 = vmatpush1.xpose.msra.mxu0 0.0
        %720 = vmatprep.mubr.f32.mxu0 0.0
        %721 = vmatmul.mubr.f32.gmra.mrb[0].mxu0 %v648
        %v722 = vpop.f32.mrb[0].mxu0
        %v723 = vadd.f32 0.0, %v722
        %v724 = vpop.f32.mrb[0].mxu0
        %725 = vmatprep.mubr.f32.mxu0 0.0
        %726 = vmatmul.mubr.f32.gmra.mrb[0].mxu0 %v650
        %v727 = vpop.f32.mrb[0].mxu0
        %v728 = vadd.f32 0.0, %v727
        %v729 = vpop.f32.mrb[0].mxu0
        %730 = vdwg.mxu0
        %v731 = vsel %vm447, %v723, -inf
        %732 = vmax.xlane.f32.xlu0 %v731
        %v733 = vpop.xlane.xlu0 %732
        %v734 = vsel %vm447, %v728, -inf
        %735 = vmax.xlane.f32.xlu0 %v734
        %v736 = vpop.xlane.xlu0 %735
        %v737 = vsub.f32 %v723, %v733
        %v738 = vsub.f32 %v728, %v736
        %v739 = vmul.f32 %v737, 1.442695
        %v740 = vpow.pop %v739
        %v741 = vmul.f32 %v738, 1.442695
        %v742 = vpow.pop %v741
        %v743 = vsel %vm447, %v740, 0.0
        %744 = vadd.xlane.f32.xlu0 %v743
        %v745 = vpop.xlane.xlu0 %744
        %v746 = vsel %vm447, %v742, 0.0
        %747 = vadd.xlane.f32.xlu0 %v746
        %v748 = vpop.xlane.xlu0 %747
        %v749 = vrcp.pop %v745
        %v750 = vrcp.pop %v748
        %v751 = vmul.f32 %v740, %v749
        %v752 = vmul.f32 %v742, %v750
        %755 = vrot.lane.b32.xlu0 %v439, 112
        %v756 = vpop.permute.xlu0 %755
        %757 = vrot.lane.b32.xlu0 %v444, 112
        %v758 = vpop.permute.xlu0 %757
        %v762 = vsel %vm447, %v751, 0
        %v765 = vsel %vm447, %v752, 0
        %767 = vmatprep.subr.mxu0 0.0
        %768 = vmatpush1.msra.mxu0 %v756
        %769 = vmatprep.subr.mxu0 0.0
        %770 = vmatpush1.msra.mxu0 %v758
        %771 = vmatprep.subr.mxu0 0.0
        %772 = vmatpush1.msra.mxu0 0.0
        %773 = vmatprep.subr.mxu0 0.0
        %774 = vmatpush1.msra.mxu0 0.0
        %775 = vmatprep.subr.mxu0 0.0
        %776 = vmatpush1.msra.mxu0 0.0
        %777 = vmatprep.subr.mxu0 0.0
        %778 = vmatpush1.msra.mxu0 0.0
        %779 = vmatprep.subr.mxu0 0.0
        %780 = vmatpush1.msra.mxu0 0.0
        %781 = vmatprep.subr.mxu0 0.0
        %782 = vmatpush1.msra.mxu0 0.0
        %783 = vmatprep.subr.mxu0 0.0
        %784 = vmatpush1.msra.mxu0 0.0
        %785 = vmatprep.subr.mxu0 0.0
        %786 = vmatpush1.msra.mxu0 0.0
        %787 = vmatprep.subr.mxu0 0.0
        %788 = vmatpush1.msra.mxu0 0.0
        %789 = vmatprep.subr.mxu0 0.0
        %790 = vmatpush1.msra.mxu0 0.0
        %791 = vmatprep.subr.mxu0 0.0
        %792 = vmatpush1.msra.mxu0 0.0
        %793 = vmatprep.subr.mxu0 0.0
        %794 = vmatpush1.msra.mxu0 0.0
        %795 = vmatprep.subr.mxu0 0.0
        %796 = vmatpush1.msra.mxu0 0.0
        %797 = vmatprep.subr.mxu0 0.0
        %798 = vmatpush1.msra.mxu0 0.0
        %799 = vmatprep.subr.mxu0 0.0
        %800 = vmatpush1.msra.mxu0 0.0
        %801 = vmatprep.subr.mxu0 0.0
        %802 = vmatpush1.msra.mxu0 0.0
        %803 = vmatprep.subr.mxu0 0.0
        %804 = vmatpush1.msra.mxu0 0.0
        %805 = vmatprep.subr.mxu0 0.0
        %806 = vmatpush1.msra.mxu0 0.0
        %807 = vmatprep.subr.mxu0 0.0
        %808 = vmatpush1.msra.mxu0 0.0
        %809 = vmatprep.subr.mxu0 0.0
        %810 = vmatpush1.msra.mxu0 0.0
        %811 = vmatprep.subr.mxu0 0.0
        %812 = vmatpush1.msra.mxu0 0.0
        %813 = vmatprep.subr.mxu0 0.0
        %814 = vmatpush1.msra.mxu0 0.0
        %815 = vmatprep.subr.mxu0 0.0
        %816 = vmatpush1.msra.mxu0 0.0
        %817 = vmatprep.subr.mxu0 0.0
        %818 = vmatpush1.msra.mxu0 0.0
        %819 = vmatprep.subr.mxu0 0.0
        %820 = vmatpush1.msra.mxu0 0.0
        %821 = vmatprep.subr.mxu0 0.0
        %822 = vmatpush1.msra.mxu0 0.0
        %823 = vmatprep.subr.mxu0 0.0
        %824 = vmatpush1.msra.mxu0 0.0
        %825 = vmatprep.subr.mxu0 0.0
        %826 = vmatpush1.msra.mxu0 0.0
        %827 = vmatprep.subr.mxu0 0.0
        %828 = vmatpush1.msra.mxu0 0.0
        %829 = vmatprep.subr.mxu0 0.0
        %830 = vmatpush1.msra.mxu0 0.0
        %831 = vmatprep.mubr.f32.mxu0 0.0
        %832 = vmatmul.mubr.f32.gmra.mrb[0].mxu0 %v762
        %v833 = vpop.f32.mrb[0].mxu0
        %v834 = vadd.f32 0.0, %v833
        %v835 = vpop.f32.mrb[0].mxu0
        %836 = vmatprep.mubr.f32.mxu0 0.0
        %837 = vmatmul.mubr.f32.gmra.mrb[0].mxu0 %v765
        %v838 = vpop.f32.mrb[0].mxu0
        %v839 = vadd.f32 0.0, %v838
        %v840 = vpop.f32.mrb[0].mxu0
        %841 = vdwg.mxu0
        %844 = vrot.lane.b32.xlu0 %v834, 16
        %v845 = vpop.permute.xlu0 %844
        %846 = vrot.lane.b32.xlu0 %v839, 16
        %v847 = vpop.permute.xlu0 %846
        %vm850 = vcmask 261248
        %851 = vst.msk [vmem:[#allocation2] sm:$0xff] %vm850, %v845
        %852 = vst.msk [vmem:[#allocation2 + $0x8] sm:$0xff] %vm850, %v847
        %853 = vrot.lane.b32.xlu0 %v362, 96
        %v854 = vpop.permute.xlu0 %853
        %855 = vrot.lane.b32.xlu0 %v368, 96
        %v856 = vpop.permute.xlu0 %855
        %857 = vrot.lane.b32.xlu0 %v364, 96
        %v858 = vpop.permute.xlu0 %857
        %859 = vrot.lane.b32.xlu0 %v370, 96
        %v860 = vpop.permute.xlu0 %859
        %v861 = vsel %vm447, %v854, 0
        %v863 = vsel %vm447, %v856, 0
        %v865 = vsel %vm447, %v858, 0
        %v867 = vsel %vm447, %v860, 0
        %869 = vmatprep.subr.mxu0 0.0
        %870 = vmatpush1.xpose.msra.mxu0 %v865
        %871 = vmatprep.subr.mxu0 0.0
        %872 = vmatpush1.xpose.msra.mxu0 %v867
        %873 = vmatprep.subr.mxu0 0.0
        %874 = vmatpush1.xpose.msra.mxu0 0.0
        %875 = vmatprep.subr.mxu0 0.0
        %876 = vmatpush1.xpose.msra.mxu0 0.0
        %877 = vmatprep.subr.mxu0 0.0
        %878 = vmatpush1.xpose.msra.mxu0 0.0
        %879 = vmatprep.subr.mxu0 0.0
        %880 = vmatpush1.xpose.msra.mxu0 0.0
        %881 = vmatprep.subr.mxu0 0.0
        %882 = vmatpush1.xpose.msra.mxu0 0.0
        %883 = vmatprep.subr.mxu0 0.0
        %884 = vmatpush1.xpose.msra.mxu0 0.0
        %885 = vmatprep.subr.mxu0 0.0
        %886 = vmatpush1.xpose.msra.mxu0 0.0
        %887 = vmatprep.subr.mxu0 0.0
        %888 = vmatpush1.xpose.msra.mxu0 0.0
        %889 = vmatprep.subr.mxu0 0.0
        %890 = vmatpush1.xpose.msra.mxu0 0.0
        %891 = vmatprep.subr.mxu0 0.0
        %892 = vmatpush1.xpose.msra.mxu0 0.0
        %893 = vmatprep.subr.mxu0 0.0
        %894 = vmatpush1.xpose.msra.mxu0 0.0
        %895 = vmatprep.subr.mxu0 0.0
        %896 = vmatpush1.xpose.msra.mxu0 0.0
        %897 = vmatprep.subr.mxu0 0.0
        %898 = vmatpush1.xpose.msra.mxu0 0.0
        %899 = vmatprep.subr.mxu0 0.0
        %900 = vmatpush1.xpose.msra.mxu0 0.0
        %901 = vmatprep.subr.mxu0 0.0
        %902 = vmatpush1.xpose.msra.mxu0 0.0
        %903 = vmatprep.subr.mxu0 0.0
        %904 = vmatpush1.xpose.msra.mxu0 0.0
        %905 = vmatprep.subr.mxu0 0.0
        %906 = vmatpush1.xpose.msra.mxu0 0.0
        %907 = vmatprep.subr.mxu0 0.0
        %908 = vmatpush1.xpose.msra.mxu0 0.0
        %909 = vmatprep.subr.mxu0 0.0
        %910 = vmatpush1.xpose.msra.mxu0 0.0
        %911 = vmatprep.subr.mxu0 0.0
        %912 = vmatpush1.xpose.msra.mxu0 0.0
        %913 = vmatprep.subr.mxu0 0.0
        %914 = vmatpush1.xpose.msra.mxu0 0.0
        %915 = vmatprep.subr.mxu0 0.0
        %916 = vmatpush1.xpose.msra.mxu0 0.0
        %917 = vmatprep.subr.mxu0 0.0
        %918 = vmatpush1.xpose.msra.mxu0 0.0
        %919 = vmatprep.subr.mxu0 0.0
        %920 = vmatpush1.xpose.msra.mxu0 0.0
        %921 = vmatprep.subr.mxu0 0.0
        %922 = vmatpush1.xpose.msra.mxu0 0.0
        %923 = vmatprep.subr.mxu0 0.0
        %924 = vmatpush1.xpose.msra.mxu0 0.0
        %925 = vmatprep.subr.mxu0 0.0
        %926 = vmatpush1.xpose.msra.mxu0 0.0
        %927 = vmatprep.subr.mxu0 0.0
        %928 = vmatpush1.xpose.msra.mxu0 0.0
        %929 = vmatprep.subr.mxu0 0.0
        %930 = vmatpush1.xpose.msra.mxu0 0.0
        %931 = vmatprep.subr.mxu0 0.0
        %932 = vmatpush1.xpose.msra.mxu0 0.0
        %933 = vmatprep.mubr.f32.mxu0 0.0
        %934 = vmatmul.mubr.f32.gmra.mrb[0].mxu0 %v861
        %v935 = vpop.f32.mrb[0].mxu0
        %v936 = vadd.f32 0.0, %v935
        %v937 = vpop.f32.mrb[0].mxu0
        %938 = vmatprep.mubr.f32.mxu0 0.0
        %939 = vmatmul.mubr.f32.gmra.mrb[0].mxu0 %v863
        %v940 = vpop.f32.mrb[0].mxu0
        %v941 = vadd.f32 0.0, %v940
        %v942 = vpop.f32.mrb[0].mxu0
        %943 = vdwg.mxu0
        %v944 = vsel %vm447, %v936, -inf
        %945 = vmax.xlane.f32.xlu0 %v944
        %v946 = vpop.xlane.xlu0 %945
        %v947 = vsel %vm447, %v941, -inf
        %948 = vmax.xlane.f32.xlu0 %v947
        %v949 = vpop.xlane.xlu0 %948
        %v950 = vsub.f32 %v936, %v946
        %v951 = vsub.f32 %v941, %v949
        %v952 = vmul.f32 %v950, 1.442695
        %v953 = vpow.pop %v952
        %v954 = vmul.f32 %v951, 1.442695
        %v955 = vpow.pop %v954
        %v956 = vsel %vm447, %v953, 0.0
        %957 = vadd.xlane.f32.xlu0 %v956
        %v958 = vpop.xlane.xlu0 %957
        %v959 = vsel %vm447, %v955, 0.0
        %960 = vadd.xlane.f32.xlu0 %v959
        %v961 = vpop.xlane.xlu0 %960
        %v962 = vrcp.pop %v958
        %v963 = vrcp.pop %v961
        %v964 = vmul.f32 %v953, %v962
        %v965 = vmul.f32 %v955, %v963
        %966 = vrot.lane.b32.xlu0 %v439, 96
        %v967 = vpop.permute.xlu0 %966
        %968 = vrot.lane.b32.xlu0 %v444, 96
        %v969 = vpop.permute.xlu0 %968
        %v973 = vsel %vm447, %v964, 0
        %v976 = vsel %vm447, %v965, 0
        %978 = vmatprep.subr.mxu0 0.0
        %979 = vmatpush1.msra.mxu0 %v967
        %980 = vmatprep.subr.mxu0 0.0
        %981 = vmatpush1.msra.mxu0 %v969
        %982 = vmatprep.subr.mxu0 0.0
        %983 = vmatpush1.msra.mxu0 0.0
        %984 = vmatprep.subr.mxu0 0.0
        %985 = vmatpush1.msra.mxu0 0.0
        %986 = vmatprep.subr.mxu0 0.0
        %987 = vmatpush1.msra.mxu0 0.0
        %988 = vmatprep.subr.mxu0 0.0
        %989 = vmatpush1.msra.mxu0 0.0
        %990 = vmatprep.subr.mxu0 0.0
        %991 = vmatpush1.msra.mxu0 0.0
        %992 = vmatprep.subr.mxu0 0.0
        %993 = vmatpush1.msra.mxu0 0.0
        %994 = vmatprep.subr.mxu0 0.0
        %995 = vmatpush1.msra.mxu0 0.0
        %996 = vmatprep.subr.mxu0 0.0
        %997 = vmatpush1.msra.mxu0 0.0
        %998 = vmatprep.subr.mxu0 0.0
        %999 = vmatpush1.msra.mxu0 0.0
        %1000 = vmatprep.subr.mxu0 0.0
        %1001 = vmatpush1.msra.mxu0 0.0
        %1002 = vmatprep.subr.mxu0 0.0
        %1003 = vmatpush1.msra.mxu0 0.0
        %1004 = vmatprep.subr.mxu0 0.0
        %1005 = vmatpush1.msra.mxu0 0.0
        %1006 = vmatprep.subr.mxu0 0.0
        %1007 = vmatpush1.msra.mxu0 0.0
        %1008 = vmatprep.subr.mxu0 0.0
        %1009 = vmatpush1.msra.mxu0 0.0
        %1010 = vmatprep.subr.mxu0 0.0
        %1011 = vmatpush1.msra.mxu0 0.0
        %1012 = vmatprep.subr.mxu0 0.0
        %1013 = vmatpush1.msra.mxu0 0.0
        %1014 = vmatprep.subr.mxu0 0.0
        %1015 = vmatpush1.msra.mxu0 0.0
        %1016 = vmatprep.subr.mxu0 0.0
        %1017 = vmatpush1.msra.mxu0 0.0
        %1018 = vmatprep.subr.mxu0 0.0
        %1019 = vmatpush1.msra.mxu0 0.0
        %1020 = vmatprep.subr.mxu0 0.0
        %1021 = vmatpush1.msra.mxu0 0.0
        %1022 = vmatprep.subr.mxu0 0.0
        %1023 = vmatpush1.msra.mxu0 0.0
        %1024 = vmatprep.subr.mxu0 0.0
        %1025 = vmatpush1.msra.mxu0 0.0
        %1026 = vmatprep.subr.mxu0 0.0
        %1027 = vmatpush1.msra.mxu0 0.0
        %1028 = vmatprep.subr.mxu0 0.0
        %1029 = vmatpush1.msra.mxu0 0.0
        %1030 = vmatprep.subr.mxu0 0.0
        %1031 = vmatpush1.msra.mxu0 0.0
        %1032 = vmatprep.subr.mxu0 0.0
        %1033 = vmatpush1.msra.mxu0 0.0
        %1034 = vmatprep.subr.mxu0 0.0
        %1035 = vmatpush1.msra.mxu0 0.0
        %1036 = vmatprep.subr.mxu0 0.0
        %1037 = vmatpush1.msra.mxu0 0.0
        %1038 = vmatprep.subr.mxu0 0.0
        %1039 = vmatpush1.msra.mxu0 0.0
        %1040 = vmatprep.subr.mxu0 0.0
        %1041 = vmatpush1.msra.mxu0 0.0
        %1042 = vmatprep.mubr.f32.mxu0 0.0
        %1043 = vmatmul.mubr.f32.gmra.mrb[0].mxu0 %v973
        %v1044 = vpop.f32.mrb[0].mxu0
        %v1045 = vadd.f32 0.0, %v1044
        %v1046 = vpop.f32.mrb[0].mxu0
        %1047 = vmatprep.mubr.f32.mxu0 0.0
        %1048 = vmatmul.mubr.f32.gmra.mrb[0].mxu0 %v976
        %v1049 = vpop.f32.mrb[0].mxu0
        %v1050 = vadd.f32 0.0, %v1049
        %v1051 = vpop.f32.mrb[0].mxu0
        %1052 = vdwg.mxu0
        %1055 = vrot.lane.b32.xlu0 %v1045, 32
        %v1056 = vpop.permute.xlu0 %1055
        %1057 = vrot.lane.b32.xlu0 %v1050, 32
        %v1058 = vpop.permute.xlu0 %1057
        %vm1061 = vcmask 392448
        %1062 = vst.msk [vmem:[#allocation2] sm:$0xff] %vm1061, %v1056
        %1063 = vst.msk [vmem:[#allocation2 + $0x8] sm:$0xff] %vm1061, %v1058
        %1064 = vrot.lane.b32.xlu0 %v362, 80
        %v1065 = vpop.permute.xlu0 %1064
        %1066 = vrot.lane.b32.xlu0 %v368, 80
        %v1067 = vpop.permute.xlu0 %1066
        %1068 = vrot.lane.b32.xlu0 %v364, 80
        %v1069 = vpop.permute.xlu0 %1068
        %1070 = vrot.lane.b32.xlu0 %v370, 80
        %v1071 = vpop.permute.xlu0 %1070
        %v1072 = vsel %vm447, %v1065, 0
        %v1074 = vsel %vm447, %v1067, 0
        %v1076 = vsel %vm447, %v1069, 0
        %v1078 = vsel %vm447, %v1071, 0
        %1080 = vmatprep.subr.mxu0 0.0
        %1081 = vmatpush1.xpose.msra.mxu0 %v1076
        %1082 = vmatprep.subr.mxu0 0.0
        %1083 = vmatpush1.xpose.msra.mxu0 %v1078
        %1084 = vmatprep.subr.mxu0 0.0
        %1085 = vmatpush1.xpose.msra.mxu0 0.0
        %1086 = vmatprep.subr.mxu0 0.0
        %1087 = vmatpush1.xpose.msra.mxu0 0.0
        %1088 = vmatprep.subr.mxu0 0.0
        %1089 = vmatpush1.xpose.msra.mxu0 0.0
        %1090 = vmatprep.subr.mxu0 0.0
        %1091 = vmatpush1.xpose.msra.mxu0 0.0
        %1092 = vmatprep.subr.mxu0 0.0
        %1093 = vmatpush1.xpose.msra.mxu0 0.0
        %1094 = vmatprep.subr.mxu0 0.0
        %1095 = vmatpush1.xpose.msra.mxu0 0.0
        %1096 = vmatprep.subr.mxu0 0.0
        %1097 = vmatpush1.xpose.msra.mxu0 0.0
        %1098 = vmatprep.subr.mxu0 0.0
        %1099 = vmatpush1.xpose.msra.mxu0 0.0
        %1100 = vmatprep.subr.mxu0 0.0
        %1101 = vmatpush1.xpose.msra.mxu0 0.0
        %1102 = vmatprep.subr.mxu0 0.0
        %1103 = vmatpush1.xpose.msra.mxu0 0.0
        %1104 = vmatprep.subr.mxu0 0.0
        %1105 = vmatpush1.xpose.msra.mxu0 0.0
        %1106 = vmatprep.subr.mxu0 0.0
        %1107 = vmatpush1.xpose.msra.mxu0 0.0
        %1108 = vmatprep.subr.mxu0 0.0
        %1109 = vmatpush1.xpose.msra.mxu0 0.0
        %1110 = vmatprep.subr.mxu0 0.0
        %1111 = vmatpush1.xpose.msra.mxu0 0.0
        %1112 = vmatprep.subr.mxu0 0.0
        %1113 = vmatpush1.xpose.msra.mxu0 0.0
        %1114 = vmatprep.subr.mxu0 0.0
        %1115 = vmatpush1.xpose.msra.mxu0 0.0
        %1116 = vmatprep.subr.mxu0 0.0
        %1117 = vmatpush1.xpose.msra.mxu0 0.0
        %1118 = vmatprep.subr.mxu0 0.0
        %1119 = vmatpush1.xpose.msra.mxu0 0.0
        %1120 = vmatprep.subr.mxu0 0.0
        %1121 = vmatpush1.xpose.msra.mxu0 0.0
        %1122 = vmatprep.subr.mxu0 0.0
        %1123 = vmatpush1.xpose.msra.mxu0 0.0
        %1124 = vmatprep.subr.mxu0 0.0
        %1125 = vmatpush1.xpose.msra.mxu0 0.0
        %1126 = vmatprep.subr.mxu0 0.0
        %1127 = vmatpush1.xpose.msra.mxu0 0.0
        %1128 = vmatprep.subr.mxu0 0.0
        %1129 = vmatpush1.xpose.msra.mxu0 0.0
        %1130 = vmatprep.subr.mxu0 0.0
        %1131 = vmatpush1.xpose.msra.mxu0 0.0
        %1132 = vmatprep.subr.mxu0 0.0
        %1133 = vmatpush1.xpose.msra.mxu0 0.0
        %1134 = vmatprep.subr.mxu0 0.0
        %1135 = vmatpush1.xpose.msra.mxu0 0.0
        %1136 = vmatprep.subr.mxu0 0.0
        %1137 = vmatpush1.xpose.msra.mxu0 0.0
        %1138 = vmatprep.subr.mxu0 0.0
        %1139 = vmatpush1.xpose.msra.mxu0 0.0
        %1140 = vmatprep.subr.mxu0 0.0
        %1141 = vmatpush1.xpose.msra.mxu0 0.0
        %1142 = vmatprep.subr.mxu0 0.0
        %1143 = vmatpush1.xpose.msra.mxu0 0.0
        %1144 = vmatprep.mubr.f32.mxu0 0.0
        %1145 = vmatmul.mubr.f32.gmra.mrb[0].mxu0 %v1072
        %v1146 = vpop.f32.mrb[0].mxu0
        %v1147 = vadd.f32 0.0, %v1146
        %v1148 = vpop.f32.mrb[0].mxu0
        %1149 = vmatprep.mubr.f32.mxu0 0.0
        %1150 = vmatmul.mubr.f32.gmra.mrb[0].mxu0 %v1074
        %v1151 = vpop.f32.mrb[0].mxu0
        %v1152 = vadd.f32 0.0, %v1151
        %v1153 = vpop.f32.mrb[0].mxu0
        %1154 = vdwg.mxu0
        %v1155 = vsel %vm447, %v1147, -inf
        %1156 = vmax.xlane.f32.xlu0 %v1155
        %v1157 = vpop.xlane.xlu0 %1156
        %v1158 = vsel %vm447, %v1152, -inf
        %1159 = vmax.xlane.f32.xlu0 %v1158
        %v1160 = vpop.xlane.xlu0 %1159
        %v1161 = vsub.f32 %v1147, %v1157
        %v1162 = vsub.f32 %v1152, %v1160
        %v1163 = vmul.f32 %v1161, 1.442695
        %v1164 = vpow.pop %v1163
        %v1165 = vmul.f32 %v1162, 1.442695
        %v1166 = vpow.pop %v1165
        %v1167 = vsel %vm447, %v1164, 0.0
        %1168 = vadd.xlane.f32.xlu0 %v1167
        %v1169 = vpop.xlane.xlu0 %1168
        %v1170 = vsel %vm447, %v1166, 0.0
        %1171 = vadd.xlane.f32.xlu0 %v1170
        %v1172 = vpop.xlane.xlu0 %1171
        %v1173 = vrcp.pop %v1169
        %v1174 = vrcp.pop %v1172
        %v1175 = vmul.f32 %v1164, %v1173
        %v1176 = vmul.f32 %v1166, %v1174
        %1177 = vrot.lane.b32.xlu0 %v439, 80
        %v1178 = vpop.permute.xlu0 %1177
        %1179 = vrot.lane.b32.xlu0 %v444, 80
        %v1180 = vpop.permute.xlu0 %1179
        %v1184 = vsel %vm447, %v1175, 0
        %v1187 = vsel %vm447, %v1176, 0
        %1189 = vmatprep.subr.mxu0 0.0
        %1190 = vmatpush1.msra.mxu0 %v1178
        %1191 = vmatprep.subr.mxu0 0.0
        %1192 = vmatpush1.msra.mxu0 %v1180
        %1193 = vmatprep.subr.mxu0 0.0
        %1194 = vmatpush1.msra.mxu0 0.0
        %1195 = vmatprep.subr.mxu0 0.0
        %1196 = vmatpush1.msra.mxu0 0.0
        %1197 = vmatprep.subr.mxu0 0.0
        %1198 = vmatpush1.msra.mxu0 0.0
        %1199 = vmatprep.subr.mxu0 0.0
        %1200 = vmatpush1.msra.mxu0 0.0
        %1201 = vmatprep.subr.mxu0 0.0
        %1202 = vmatpush1.msra.mxu0 0.0
        %1203 = vmatprep.subr.mxu0 0.0
        %1204 = vmatpush1.msra.mxu0 0.0
        %1205 = vmatprep.subr.mxu0 0.0
        %1206 = vmatpush1.msra.mxu0 0.0
        %1207 = vmatprep.subr.mxu0 0.0
        %1208 = vmatpush1.msra.mxu0 0.0
        %1209 = vmatprep.subr.mxu0 0.0
        %1210 = vmatpush1.msra.mxu0 0.0
        %1211 = vmatprep.subr.mxu0 0.0
        %1212 = vmatpush1.msra.mxu0 0.0
        %1213 = vmatprep.subr.mxu0 0.0
        %1214 = vmatpush1.msra.mxu0 0.0
        %1215 = vmatprep.subr.mxu0 0.0
        %1216 = vmatpush1.msra.mxu0 0.0
        %1217 = vmatprep.subr.mxu0 0.0
        %1218 = vmatpush1.msra.mxu0 0.0
        %1219 = vmatprep.subr.mxu0 0.0
        %1220 = vmatpush1.msra.mxu0 0.0
        %1221 = vmatprep.subr.mxu0 0.0
        %1222 = vmatpush1.msra.mxu0 0.0
        %1223 = vmatprep.subr.mxu0 0.0
        %1224 = vmatpush1.msra.mxu0 0.0
        %1225 = vmatprep.subr.mxu0 0.0
        %1226 = vmatpush1.msra.mxu0 0.0
        %1227 = vmatprep.subr.mxu0 0.0
        %1228 = vmatpush1.msra.mxu0 0.0
        %1229 = vmatprep.subr.mxu0 0.0
        %1230 = vmatpush1.msra.mxu0 0.0
        %1231 = vmatprep.subr.mxu0 0.0
        %1232 = vmatpush1.msra.mxu0 0.0
        %1233 = vmatprep.subr.mxu0 0.0
        %1234 = vmatpush1.msra.mxu0 0.0
        %1235 = vmatprep.subr.mxu0 0.0
        %1236 = vmatpush1.msra.mxu0 0.0
        %1237 = vmatprep.subr.mxu0 0.0
        %1238 = vmatpush1.msra.mxu0 0.0
        %1239 = vmatprep.subr.mxu0 0.0
        %1240 = vmatpush1.msra.mxu0 0.0
        %1241 = vmatprep.subr.mxu0 0.0
        %1242 = vmatpush1.msra.mxu0 0.0
        %1243 = vmatprep.subr.mxu0 0.0
        %1244 = vmatpush1.msra.mxu0 0.0
        %1245 = vmatprep.subr.mxu0 0.0
        %1246 = vmatpush1.msra.mxu0 0.0
        %1247 = vmatprep.subr.mxu0 0.0
        %1248 = vmatpush1.msra.mxu0 0.0
        %1249 = vmatprep.subr.mxu0 0.0
        %1250 = vmatpush1.msra.mxu0 0.0
        %1251 = vmatprep.subr.mxu0 0.0
        %1252 = vmatpush1.msra.mxu0 0.0
        %1253 = vmatprep.mubr.f32.mxu0 0.0
        %1254 = vmatmul.mubr.f32.gmra.mrb[0].mxu0 %v1184
        %v1255 = vpop.f32.mrb[0].mxu0
        %v1256 = vadd.f32 0.0, %v1255
        %v1257 = vpop.f32.mrb[0].mxu0
        %1258 = vmatprep.mubr.f32.mxu0 0.0
        %1259 = vmatmul.mubr.f32.gmra.mrb[0].mxu0 %v1187
        %v1260 = vpop.f32.mrb[0].mxu0
        %v1261 = vadd.f32 0.0, %v1260
        %v1262 = vpop.f32.mrb[0].mxu0
        %1263 = vdwg.mxu0
        %1266 = vrot.lane.b32.xlu0 %v1256, 48
        %v1267 = vpop.permute.xlu0 %1266
        %1268 = vrot.lane.b32.xlu0 %v1261, 48
        %v1269 = vpop.permute.xlu0 %1268
        %vm1272 = vcmask 523648
        %1273 = vst.msk [vmem:[#allocation2] sm:$0xff] %vm1272, %v1267
        %1274 = vst.msk [vmem:[#allocation2 + $0x8] sm:$0xff] %vm1272, %v1269
        %1275 = vrot.lane.b32.xlu0 %v362, 64
        %v1276 = vpop.permute.xlu0 %1275
        %1277 = vrot.lane.b32.xlu0 %v368, 64
        %v1278 = vpop.permute.xlu0 %1277
        %1279 = vrot.lane.b32.xlu0 %v364, 64
        %v1280 = vpop.permute.xlu0 %1279
        %1281 = vrot.lane.b32.xlu0 %v370, 64
        %v1282 = vpop.permute.xlu0 %1281
        %v1283 = vsel %vm447, %v1276, 0
        %v1285 = vsel %vm447, %v1278, 0
        %v1287 = vsel %vm447, %v1280, 0
        %v1289 = vsel %vm447, %v1282, 0
        %1291 = vmatprep.subr.mxu0 0.0
        %1292 = vmatpush1.xpose.msra.mxu0 %v1287
        %1293 = vmatprep.subr.mxu0 0.0
        %1294 = vmatpush1.xpose.msra.mxu0 %v1289
        %1295 = vmatprep.subr.mxu0 0.0
        %1296 = vmatpush1.xpose.msra.mxu0 0.0
        %1297 = vmatprep.subr.mxu0 0.0
        %1298 = vmatpush1.xpose.msra.mxu0 0.0
        %1299 = vmatprep.subr.mxu0 0.0
        %1300 = vmatpush1.xpose.msra.mxu0 0.0
        %1301 = vmatprep.subr.mxu0 0.0
        %1302 = vmatpush1.xpose.msra.mxu0 0.0
        %1303 = vmatprep.subr.mxu0 0.0
        %1304 = vmatpush1.xpose.msra.mxu0 0.0
        %1305 = vmatprep.subr.mxu0 0.0
        %1306 = vmatpush1.xpose.msra.mxu0 0.0
        %1307 = vmatprep.subr.mxu0 0.0
        %1308 = vmatpush1.xpose.msra.mxu0 0.0
        %1309 = vmatprep.subr.mxu0 0.0
        %1310 = vmatpush1.xpose.msra.mxu0 0.0
        %1311 = vmatprep.subr.mxu0 0.0
        %1312 = vmatpush1.xpose.msra.mxu0 0.0
        %1313 = vmatprep.subr.mxu0 0.0
        %1314 = vmatpush1.xpose.msra.mxu0 0.0
        %1315 = vmatprep.subr.mxu0 0.0
        %1316 = vmatpush1.xpose.msra.mxu0 0.0
        %1317 = vmatprep.subr.mxu0 0.0
        %1318 = vmatpush1.xpose.msra.mxu0 0.0
        %1319 = vmatprep.subr.mxu0 0.0
        %1320 = vmatpush1.xpose.msra.mxu0 0.0
        %1321 = vmatprep.subr.mxu0 0.0
        %1322 = vmatpush1.xpose.msra.mxu0 0.0
        %1323 = vmatprep.subr.mxu0 0.0
        %1324 = vmatpush1.xpose.msra.mxu0 0.0
        %1325 = vmatprep.subr.mxu0 0.0
        %1326 = vmatpush1.xpose.msra.mxu0 0.0
        %1327 = vmatprep.subr.mxu0 0.0
        %1328 = vmatpush1.xpose.msra.mxu0 0.0
        %1329 = vmatprep.subr.mxu0 0.0
        %1330 = vmatpush1.xpose.msra.mxu0 0.0
        %1331 = vmatprep.subr.mxu0 0.0
        %1332 = vmatpush1.xpose.msra.mxu0 0.0
        %1333 = vmatprep.subr.mxu0 0.0
        %1334 = vmatpush1.xpose.msra.mxu0 0.0
        %1335 = vmatprep.subr.mxu0 0.0
        %1336 = vmatpush1.xpose.msra.mxu0 0.0
        %1337 = vmatprep.subr.mxu0 0.0
        %1338 = vmatpush1.xpose.msra.mxu0 0.0
        %1339 = vmatprep.subr.mxu0 0.0
        %1340 = vmatpush1.xpose.msra.mxu0 0.0
        %1341 = vmatprep.subr.mxu0 0.0
        %1342 = vmatpush1.xpose.msra.mxu0 0.0
        %1343 = vmatprep.subr.mxu0 0.0
        %1344 = vmatpush1.xpose.msra.mxu0 0.0
        %1345 = vmatprep.subr.mxu0 0.0
        %1346 = vmatpush1.xpose.msra.mxu0 0.0
        %1347 = vmatprep.subr.mxu0 0.0
        %1348 = vmatpush1.xpose.msra.mxu0 0.0
        %1349 = vmatprep.subr.mxu0 0.0
        %1350 = vmatpush1.xpose.msra.mxu0 0.0
        %1351 = vmatprep.subr.mxu0 0.0
        %1352 = vmatpush1.xpose.msra.mxu0 0.0
        %1353 = vmatprep.subr.mxu0 0.0
        %1354 = vmatpush1.xpose.msra.mxu0 0.0
        %1355 = vmatprep.mubr.f32.mxu0 0.0
        %1356 = vmatmul.mubr.f32.gmra.mrb[0].mxu0 %v1283
        %v1357 = vpop.f32.mrb[0].mxu0
        %v1358 = vadd.f32 0.0, %v1357
        %v1359 = vpop.f32.mrb[0].mxu0
        %1360 = vmatprep.mubr.f32.mxu0 0.0
        %1361 = vmatmul.mubr.f32.gmra.mrb[0].mxu0 %v1285
        %v1362 = vpop.f32.mrb[0].mxu0
        %v1363 = vadd.f32 0.0, %v1362
        %v1364 = vpop.f32.mrb[0].mxu0
        %1365 = vdwg.mxu0
        %v1366 = vsel %vm447, %v1358, -inf
        %1367 = vmax.xlane.f32.xlu0 %v1366
        %v1368 = vpop.xlane.xlu0 %1367
        %v1369 = vsel %vm447, %v1363, -inf
        %1370 = vmax.xlane.f32.xlu0 %v1369
        %v1371 = vpop.xlane.xlu0 %1370
        %v1372 = vsub.f32 %v1358, %v1368
        %v1373 = vsub.f32 %v1363, %v1371
        %v1374 = vmul.f32 %v1372, 1.442695
        %v1375 = vpow.pop %v1374
        %v1376 = vmul.f32 %v1373, 1.442695
        %v1377 = vpow.pop %v1376
        %v1378 = vsel %vm447, %v1375, 0.0
        %1379 = vadd.xlane.f32.xlu0 %v1378
        %v1380 = vpop.xlane.xlu0 %1379
        %v1381 = vsel %vm447, %v1377, 0.0
        %1382 = vadd.xlane.f32.xlu0 %v1381
        %v1383 = vpop.xlane.xlu0 %1382
        %v1384 = vrcp.pop %v1380
        %v1385 = vrcp.pop %v1383
        %v1386 = vmul.f32 %v1375, %v1384
        %v1387 = vmul.f32 %v1377, %v1385
        %1388 = vrot.lane.b32.xlu0 %v439, 64
        %v1389 = vpop.permute.xlu0 %1388
        %1390 = vrot.lane.b32.xlu0 %v444, 64
        %v1391 = vpop.permute.xlu0 %1390
        %v1395 = vsel %vm447, %v1386, 0
        %v1398 = vsel %vm447, %v1387, 0
        %1400 = vmatprep.subr.mxu0 0.0
        %1401 = vmatpush1.msra.mxu0 %v1389
        %1402 = vmatprep.subr.mxu0 0.0
        %1403 = vmatpush1.msra.mxu0 %v1391
        %1404 = vmatprep.subr.mxu0 0.0
        %1405 = vmatpush1.msra.mxu0 0.0
        %1406 = vmatprep.subr.mxu0 0.0
        %1407 = vmatpush1.msra.mxu0 0.0
        %1408 = vmatprep.subr.mxu0 0.0
        %1409 = vmatpush1.msra.mxu0 0.0
        %1410 = vmatprep.subr.mxu0 0.0
        %1411 = vmatpush1.msra.mxu0 0.0
        %1412 = vmatprep.subr.mxu0 0.0
        %1413 = vmatpush1.msra.mxu0 0.0
        %1414 = vmatprep.subr.mxu0 0.0
        %1415 = vmatpush1.msra.mxu0 0.0
        %1416 = vmatprep.subr.mxu0 0.0
        %1417 = vmatpush1.msra.mxu0 0.0
        %1418 = vmatprep.subr.mxu0 0.0
        %1419 = vmatpush1.msra.mxu0 0.0
        %1420 = vmatprep.subr.mxu0 0.0
        %1421 = vmatpush1.msra.mxu0 0.0
        %1422 = vmatprep.subr.mxu0 0.0
        %1423 = vmatpush1.msra.mxu0 0.0
        %1424 = vmatprep.subr.mxu0 0.0
        %1425 = vmatpush1.msra.mxu0 0.0
        %1426 = vmatprep.subr.mxu0 0.0
        %1427 = vmatpush1.msra.mxu0 0.0
        %1428 = vmatprep.subr.mxu0 0.0
        %1429 = vmatpush1.msra.mxu0 0.0
        %1430 = vmatprep.subr.mxu0 0.0
        %1431 = vmatpush1.msra.mxu0 0.0
        %1432 = vmatprep.subr.mxu0 0.0
        %1433 = vmatpush1.msra.mxu0 0.0
        %1434 = vmatprep.subr.mxu0 0.0
        %1435 = vmatpush1.msra.mxu0 0.0
        %1436 = vmatprep.subr.mxu0 0.0
        %1437 = vmatpush1.msra.mxu0 0.0
        %1438 = vmatprep.subr.mxu0 0.0
        %1439 = vmatpush1.msra.mxu0 0.0
        %1440 = vmatprep.subr.mxu0 0.0
        %1441 = vmatpush1.msra.mxu0 0.0
        %1442 = vmatprep.subr.mxu0 0.0
        %1443 = vmatpush1.msra.mxu0 0.0
        %1444 = vmatprep.subr.mxu0 0.0
        %1445 = vmatpush1.msra.mxu0 0.0
        %1446 = vmatprep.subr.mxu0 0.0
        %1447 = vmatpush1.msra.mxu0 0.0
        %1448 = vmatprep.subr.mxu0 0.0
        %1449 = vmatpush1.msra.mxu0 0.0
        %1450 = vmatprep.subr.mxu0 0.0
        %1451 = vmatpush1.msra.mxu0 0.0
        %1452 = vmatprep.subr.mxu0 0.0
        %1453 = vmatpush1.msra.mxu0 0.0
        %1454 = vmatprep.subr.mxu0 0.0
        %1455 = vmatpush1.msra.mxu0 0.0
        %1456 = vmatprep.subr.mxu0 0.0
        %1457 = vmatpush1.msra.mxu0 0.0
        %1458 = vmatprep.subr.mxu0 0.0
        %1459 = vmatpush1.msra.mxu0 0.0
        %1460 = vmatprep.subr.mxu0 0.0
        %1461 = vmatpush1.msra.mxu0 0.0
        %1462 = vmatprep.subr.mxu0 0.0
        %1463 = vmatpush1.msra.mxu0 0.0
        %1464 = vmatprep.mubr.f32.mxu0 0.0
        %1465 = vmatmul.mubr.f32.gmra.mrb[0].mxu0 %v1395
        %v1466 = vpop.f32.mrb[0].mxu0
        %v1467 = vadd.f32 0.0, %v1466
        %v1468 = vpop.f32.mrb[0].mxu0
        %1469 = vmatprep.mubr.f32.mxu0 0.0
        %1470 = vmatmul.mubr.f32.gmra.mrb[0].mxu0 %v1398
        %v1471 = vpop.f32.mrb[0].mxu0
        %v1472 = vadd.f32 0.0, %v1471
        %v1473 = vpop.f32.mrb[0].mxu0
        %1474 = vdwg.mxu0
        %1477 = vrot.lane.b32.xlu0 %v1467, 64
        %v1478 = vpop.permute.xlu0 %1477
        %1479 = vrot.lane.b32.xlu0 %v1472, 64
        %v1480 = vpop.permute.xlu0 %1479
        %vm1483 = vcmask 654848
        %1484 = vst.msk [vmem:[#allocation2] sm:$0xff] %vm1483, %v1478
        %1485 = vst.msk [vmem:[#allocation2 + $0x8] sm:$0xff] %vm1483, %v1480
        %1486 = vrot.lane.b32.xlu0 %v362, 48
        %v1487 = vpop.permute.xlu0 %1486
        %1488 = vrot.lane.b32.xlu0 %v368, 48
        %v1489 = vpop.permute.xlu0 %1488
        %1490 = vrot.lane.b32.xlu0 %v364, 48
        %v1491 = vpop.permute.xlu0 %1490
        %1492 = vrot.lane.b32.xlu0 %v370, 48
        %v1493 = vpop.permute.xlu0 %1492
        %v1494 = vsel %vm447, %v1487, 0
        %v1496 = vsel %vm447, %v1489, 0
        %v1498 = vsel %vm447, %v1491, 0
        %v1500 = vsel %vm447, %v1493, 0
        %1502 = vmatprep.subr.mxu0 0.0
        %1503 = vmatpush1.xpose.msra.mxu0 %v1498
        %1504 = vmatprep.subr.mxu0 0.0
        %1505 = vmatpush1.xpose.msra.mxu0 %v1500
        %1506 = vmatprep.subr.mxu0 0.0
        %1507 = vmatpush1.xpose.msra.mxu0 0.0
        %1508 = vmatprep.subr.mxu0 0.0
        %1509 = vmatpush1.xpose.msra.mxu0 0.0
        %1510 = vmatprep.subr.mxu0 0.0
        %1511 = vmatpush1.xpose.msra.mxu0 0.0
        %1512 = vmatprep.subr.mxu0 0.0
        %1513 = vmatpush1.xpose.msra.mxu0 0.0
        %1514 = vmatprep.subr.mxu0 0.0
        %1515 = vmatpush1.xpose.msra.mxu0 0.0
        %1516 = vmatprep.subr.mxu0 0.0
        %1517 = vmatpush1.xpose.msra.mxu0 0.0
        %1518 = vmatprep.subr.mxu0 0.0
        %1519 = vmatpush1.xpose.msra.mxu0 0.0
        %1520 = vmatprep.subr.mxu0 0.0
        %1521 = vmatpush1.xpose.msra.mxu0 0.0
        %1522 = vmatprep.subr.mxu0 0.0
        %1523 = vmatpush1.xpose.msra.mxu0 0.0
        %1524 = vmatprep.subr.mxu0 0.0
        %1525 = vmatpush1.xpose.msra.mxu0 0.0
        %1526 = vmatprep.subr.mxu0 0.0
        %1527 = vmatpush1.xpose.msra.mxu0 0.0
        %1528 = vmatprep.subr.mxu0 0.0
        %1529 = vmatpush1.xpose.msra.mxu0 0.0
        %1530 = vmatprep.subr.mxu0 0.0
        %1531 = vmatpush1.xpose.msra.mxu0 0.0
        %1532 = vmatprep.subr.mxu0 0.0
        %1533 = vmatpush1.xpose.msra.mxu0 0.0
        %1534 = vmatprep.subr.mxu0 0.0
        %1535 = vmatpush1.xpose.msra.mxu0 0.0
        %1536 = vmatprep.subr.mxu0 0.0
        %1537 = vmatpush1.xpose.msra.mxu0 0.0
        %1538 = vmatprep.subr.mxu0 0.0
        %1539 = vmatpush1.xpose.msra.mxu0 0.0
        %1540 = vmatprep.subr.mxu0 0.0
        %1541 = vmatpush1.xpose.msra.mxu0 0.0
        %1542 = vmatprep.subr.mxu0 0.0
        %1543 = vmatpush1.xpose.msra.mxu0 0.0
        %1544 = vmatprep.subr.mxu0 0.0
        %1545 = vmatpush1.xpose.msra.mxu0 0.0
        %1546 = vmatprep.subr.mxu0 0.0
        %1547 = vmatpush1.xpose.msra.mxu0 0.0
        %1548 = vmatprep.subr.mxu0 0.0
        %1549 = vmatpush1.xpose.msra.mxu0 0.0
        %1550 = vmatprep.subr.mxu0 0.0
        %1551 = vmatpush1.xpose.msra.mxu0 0.0
        %1552 = vmatprep.subr.mxu0 0.0
        %1553 = vmatpush1.xpose.msra.mxu0 0.0
        %1554 = vmatprep.subr.mxu0 0.0
        %1555 = vmatpush1.xpose.msra.mxu0 0.0
        %1556 = vmatprep.subr.mxu0 0.0
        %1557 = vmatpush1.xpose.msra.mxu0 0.0
        %1558 = vmatprep.subr.mxu0 0.0
        %1559 = vmatpush1.xpose.msra.mxu0 0.0
        %1560 = vmatprep.subr.mxu0 0.0
        %1561 = vmatpush1.xpose.msra.mxu0 0.0
        %1562 = vmatprep.subr.mxu0 0.0
        %1563 = vmatpush1.xpose.msra.mxu0 0.0
        %1564 = vmatprep.subr.mxu0 0.0
        %1565 = vmatpush1.xpose.msra.mxu0 0.0
        %1566 = vmatprep.mubr.f32.mxu0 0.0
        %1567 = vmatmul.mubr.f32.gmra.mrb[0].mxu0 %v1494
        %v1568 = vpop.f32.mrb[0].mxu0
        %v1569 = vadd.f32 0.0, %v1568
        %v1570 = vpop.f32.mrb[0].mxu0
        %1571 = vmatprep.mubr.f32.mxu0 0.0
        %1572 = vmatmul.mubr.f32.gmra.mrb[0].mxu0 %v1496
        %v1573 = vpop.f32.mrb[0].mxu0
        %v1574 = vadd.f32 0.0, %v1573
        %v1575 = vpop.f32.mrb[0].mxu0
        %1576 = vdwg.mxu0
        %v1577 = vsel %vm447, %v1569, -inf
        %1578 = vmax.xlane.f32.xlu0 %v1577
        %v1579 = vpop.xlane.xlu0 %1578
        %v1580 = vsel %vm447, %v1574, -inf
        %1581 = vmax.xlane.f32.xlu0 %v1580
        %v1582 = vpop.xlane.xlu0 %1581
        %v1583 = vsub.f32 %v1569, %v1579
        %v1584 = vsub.f32 %v1574, %v1582
        %v1585 = vmul.f32 %v1583, 1.442695
        %v1586 = vpow.pop %v1585
        %v1587 = vmul.f32 %v1584, 1.442695
        %v1588 = vpow.pop %v1587
        %v1589 = vsel %vm447, %v1586, 0.0
        %1590 = vadd.xlane.f32.xlu0 %v1589
        %v1591 = vpop.xlane.xlu0 %1590
        %v1592 = vsel %vm447, %v1588, 0.0
        %1593 = vadd.xlane.f32.xlu0 %v1592
        %v1594 = vpop.xlane.xlu0 %1593
        %v1595 = vrcp.pop %v1591
        %v1596 = vrcp.pop %v1594
        %v1597 = vmul.f32 %v1586, %v1595
        %v1598 = vmul.f32 %v1588, %v1596
        %1599 = vrot.lane.b32.xlu0 %v439, 48
        %v1600 = vpop.permute.xlu0 %1599
        %1601 = vrot.lane.b32.xlu0 %v444, 48
        %v1602 = vpop.permute.xlu0 %1601
        %v1606 = vsel %vm447, %v1597, 0
        %v1609 = vsel %vm447, %v1598, 0
        %1611 = vmatprep.subr.mxu0 0.0
        %1612 = vmatpush1.msra.mxu0 %v1600
        %1613 = vmatprep.subr.mxu0 0.0
        %1614 = vmatpush1.msra.mxu0 %v1602
        %1615 = vmatprep.subr.mxu0 0.0
        %1616 = vmatpush1.msra.mxu0 0.0
        %1617 = vmatprep.subr.mxu0 0.0
        %1618 = vmatpush1.msra.mxu0 0.0
        %1619 = vmatprep.subr.mxu0 0.0
        %1620 = vmatpush1.msra.mxu0 0.0
        %1621 = vmatprep.subr.mxu0 0.0
        %1622 = vmatpush1.msra.mxu0 0.0
        %1623 = vmatprep.subr.mxu0 0.0
        %1624 = vmatpush1.msra.mxu0 0.0
        %1625 = vmatprep.subr.mxu0 0.0
        %1626 = vmatpush1.msra.mxu0 0.0
        %1627 = vmatprep.subr.mxu0 0.0
        %1628 = vmatpush1.msra.mxu0 0.0
        %1629 = vmatprep.subr.mxu0 0.0
        %1630 = vmatpush1.msra.mxu0 0.0
        %1631 = vmatprep.subr.mxu0 0.0
        %1632 = vmatpush1.msra.mxu0 0.0
        %1633 = vmatprep.subr.mxu0 0.0
        %1634 = vmatpush1.msra.mxu0 0.0
        %1635 = vmatprep.subr.mxu0 0.0
        %1636 = vmatpush1.msra.mxu0 0.0
        %1637 = vmatprep.subr.mxu0 0.0
        %1638 = vmatpush1.msra.mxu0 0.0
        %1639 = vmatprep.subr.mxu0 0.0
        %1640 = vmatpush1.msra.mxu0 0.0
        %1641 = vmatprep.subr.mxu0 0.0
        %1642 = vmatpush1.msra.mxu0 0.0
        %1643 = vmatprep.subr.mxu0 0.0
        %1644 = vmatpush1.msra.mxu0 0.0
        %1645 = vmatprep.subr.mxu0 0.0
        %1646 = vmatpush1.msra.mxu0 0.0
        %1647 = vmatprep.subr.mxu0 0.0
        %1648 = vmatpush1.msra.mxu0 0.0
        %1649 = vmatprep.subr.mxu0 0.0
        %1650 = vmatpush1.msra.mxu0 0.0
        %1651 = vmatprep.subr.mxu0 0.0
        %1652 = vmatpush1.msra.mxu0 0.0
        %1653 = vmatprep.subr.mxu0 0.0
        %1654 = vmatpush1.msra.mxu0 0.0
        %1655 = vmatprep.subr.mxu0 0.0
        %1656 = vmatpush1.msra.mxu0 0.0
        %1657 = vmatprep.subr.mxu0 0.0
        %1658 = vmatpush1.msra.mxu0 0.0
        %1659 = vmatprep.subr.mxu0 0.0
        %1660 = vmatpush1.msra.mxu0 0.0
        %1661 = vmatprep.subr.mxu0 0.0
        %1662 = vmatpush1.msra.mxu0 0.0
        %1663 = vmatprep.subr.mxu0 0.0
        %1664 = vmatpush1.msra.mxu0 0.0
        %1665 = vmatprep.subr.mxu0 0.0
        %1666 = vmatpush1.msra.mxu0 0.0
        %1667 = vmatprep.subr.mxu0 0.0
        %1668 = vmatpush1.msra.mxu0 0.0
        %1669 = vmatprep.subr.mxu0 0.0
        %1670 = vmatpush1.msra.mxu0 0.0
        %1671 = vmatprep.subr.mxu0 0.0
        %1672 = vmatpush1.msra.mxu0 0.0
        %1673 = vmatprep.subr.mxu0 0.0
        %1674 = vmatpush1.msra.mxu0 0.0
        %1675 = vmatprep.mubr.f32.mxu0 0.0
        %1676 = vmatmul.mubr.f32.gmra.mrb[0].mxu0 %v1606
        %v1677 = vpop.f32.mrb[0].mxu0
        %v1678 = vadd.f32 0.0, %v1677
        %v1679 = vpop.f32.mrb[0].mxu0
        %1680 = vmatprep.mubr.f32.mxu0 0.0
        %1681 = vmatmul.mubr.f32.gmra.mrb[0].mxu0 %v1609
        %v1682 = vpop.f32.mrb[0].mxu0
        %v1683 = vadd.f32 0.0, %v1682
        %v1684 = vpop.f32.mrb[0].mxu0
        %1685 = vdwg.mxu0
        %1688 = vrot.lane.b32.xlu0 %v1678, 80
        %v1689 = vpop.permute.xlu0 %1688
        %1690 = vrot.lane.b32.xlu0 %v1683, 80
        %v1691 = vpop.permute.xlu0 %1690
        %vm1694 = vcmask 786048
        %1695 = vst.msk [vmem:[#allocation2] sm:$0xff] %vm1694, %v1689
        %1696 = vst.msk [vmem:[#allocation2 + $0x8] sm:$0xff] %vm1694, %v1691
        %1697 = vrot.lane.b32.xlu0 %v362, 32
        %v1698 = vpop.permute.xlu0 %1697
        %1699 = vrot.lane.b32.xlu0 %v368, 32
        %v1700 = vpop.permute.xlu0 %1699
        %1701 = vrot.lane.b32.xlu0 %v364, 32
        %v1702 = vpop.permute.xlu0 %1701
        %1703 = vrot.lane.b32.xlu0 %v370, 32
        %v1704 = vpop.permute.xlu0 %1703
        %v1705 = vsel %vm447, %v1698, 0
        %v1707 = vsel %vm447, %v1700, 0
        %v1709 = vsel %vm447, %v1702, 0
        %v1711 = vsel %vm447, %v1704, 0
        %1713 = vmatprep.subr.mxu0 0.0
        %1714 = vmatpush1.xpose.msra.mxu0 %v1709
        %1715 = vmatprep.subr.mxu0 0.0
        %1716 = vmatpush1.xpose.msra.mxu0 %v1711
        %1717 = vmatprep.subr.mxu0 0.0
        %1718 = vmatpush1.xpose.msra.mxu0 0.0
        %1719 = vmatprep.subr.mxu0 0.0
        %1720 = vmatpush1.xpose.msra.mxu0 0.0
        %1721 = vmatprep.subr.mxu0 0.0
        %1722 = vmatpush1.xpose.msra.mxu0 0.0
        %1723 = vmatprep.subr.mxu0 0.0
        %1724 = vmatpush1.xpose.msra.mxu0 0.0
        %1725 = vmatprep.subr.mxu0 0.0
        %1726 = vmatpush1.xpose.msra.mxu0 0.0
        %1727 = vmatprep.subr.mxu0 0.0
        %1728 = vmatpush1.xpose.msra.mxu0 0.0
        %1729 = vmatprep.subr.mxu0 0.0
        %1730 = vmatpush1.xpose.msra.mxu0 0.0
        %1731 = vmatprep.subr.mxu0 0.0
        %1732 = vmatpush1.xpose.msra.mxu0 0.0
        %1733 = vmatprep.subr.mxu0 0.0
        %1734 = vmatpush1.xpose.msra.mxu0 0.0
        %1735 = vmatprep.subr.mxu0 0.0
        %1736 = vmatpush1.xpose.msra.mxu0 0.0
        %1737 = vmatprep.subr.mxu0 0.0
        %1738 = vmatpush1.xpose.msra.mxu0 0.0
        %1739 = vmatprep.subr.mxu0 0.0
        %1740 = vmatpush1.xpose.msra.mxu0 0.0
        %1741 = vmatprep.subr.mxu0 0.0
        %1742 = vmatpush1.xpose.msra.mxu0 0.0
        %1743 = vmatprep.subr.mxu0 0.0
        %1744 = vmatpush1.xpose.msra.mxu0 0.0
        %1745 = vmatprep.subr.mxu0 0.0
        %1746 = vmatpush1.xpose.msra.mxu0 0.0
        %1747 = vmatprep.subr.mxu0 0.0
        %1748 = vmatpush1.xpose.msra.mxu0 0.0
        %1749 = vmatprep.subr.mxu0 0.0
        %1750 = vmatpush1.xpose.msra.mxu0 0.0
        %1751 = vmatprep.subr.mxu0 0.0
        %1752 = vmatpush1.xpose.msra.mxu0 0.0
        %1753 = vmatprep.subr.mxu0 0.0
        %1754 = vmatpush1.xpose.msra.mxu0 0.0
        %1755 = vmatprep.subr.mxu0 0.0
        %1756 = vmatpush1.xpose.msra.mxu0 0.0
        %1757 = vmatprep.subr.mxu0 0.0
        %1758 = vmatpush1.xpose.msra.mxu0 0.0
        %1759 = vmatprep.subr.mxu0 0.0
        %1760 = vmatpush1.xpose.msra.mxu0 0.0
        %1761 = vmatprep.subr.mxu0 0.0
        %1762 = vmatpush1.xpose.msra.mxu0 0.0
        %1763 = vmatprep.subr.mxu0 0.0
        %1764 = vmatpush1.xpose.msra.mxu0 0.0
        %1765 = vmatprep.subr.mxu0 0.0
        %1766 = vmatpush1.xpose.msra.mxu0 0.0
        %1767 = vmatprep.subr.mxu0 0.0
        %1768 = vmatpush1.xpose.msra.mxu0 0.0
        %1769 = vmatprep.subr.mxu0 0.0
        %1770 = vmatpush1.xpose.msra.mxu0 0.0
        %1771 = vmatprep.subr.mxu0 0.0
        %1772 = vmatpush1.xpose.msra.mxu0 0.0
        %1773 = vmatprep.subr.mxu0 0.0
        %1774 = vmatpush1.xpose.msra.mxu0 0.0
        %1775 = vmatprep.subr.mxu0 0.0
        %1776 = vmatpush1.xpose.msra.mxu0 0.0
        %1777 = vmatprep.mubr.f32.mxu0 0.0
        %1778 = vmatmul.mubr.f32.gmra.mrb[0].mxu0 %v1705
        %v1779 = vpop.f32.mrb[0].mxu0
        %v1780 = vadd.f32 0.0, %v1779
        %v1781 = vpop.f32.mrb[0].mxu0
        %1782 = vmatprep.mubr.f32.mxu0 0.0
        %1783 = vmatmul.mubr.f32.gmra.mrb[0].mxu0 %v1707
        %v1784 = vpop.f32.mrb[0].mxu0
        %v1785 = vadd.f32 0.0, %v1784
        %v1786 = vpop.f32.mrb[0].mxu0
        %1787 = vdwg.mxu0
        %v1788 = vsel %vm447, %v1780, -inf
        %1789 = vmax.xlane.f32.xlu0 %v1788
        %v1790 = vpop.xlane.xlu0 %1789
        %v1791 = vsel %vm447, %v1785, -inf
        %1792 = vmax.xlane.f32.xlu0 %v1791
        %v1793 = vpop.xlane.xlu0 %1792
        %v1794 = vsub.f32 %v1780, %v1790
        %v1795 = vsub.f32 %v1785, %v1793
        %v1796 = vmul.f32 %v1794, 1.442695
        %v1797 = vpow.pop %v1796
        %v1798 = vmul.f32 %v1795, 1.442695
        %v1799 = vpow.pop %v1798
        %v1800 = vsel %vm447, %v1797, 0.0
        %1801 = vadd.xlane.f32.xlu0 %v1800
        %v1802 = vpop.xlane.xlu0 %1801
        %v1803 = vsel %vm447, %v1799, 0.0
        %1804 = vadd.xlane.f32.xlu0 %v1803
        %v1805 = vpop.xlane.xlu0 %1804
        %v1806 = vrcp.pop %v1802
        %v1807 = vrcp.pop %v1805
        %v1808 = vmul.f32 %v1797, %v1806
        %v1809 = vmul.f32 %v1799, %v1807
        %1810 = vrot.lane.b32.xlu0 %v439, 32
        %v1811 = vpop.permute.xlu0 %1810
        %1812 = vrot.lane.b32.xlu0 %v444, 32
        %v1813 = vpop.permute.xlu0 %1812
        %v1817 = vsel %vm447, %v1808, 0
        %v1820 = vsel %vm447, %v1809, 0
        %1822 = vmatprep.subr.mxu0 0.0
        %1823 = vmatpush1.msra.mxu0 %v1811
        %1824 = vmatprep.subr.mxu0 0.0
        %1825 = vmatpush1.msra.mxu0 %v1813
        %1826 = vmatprep.subr.mxu0 0.0
        %1827 = vmatpush1.msra.mxu0 0.0
        %1828 = vmatprep.subr.mxu0 0.0
        %1829 = vmatpush1.msra.mxu0 0.0
        %1830 = vmatprep.subr.mxu0 0.0
        %1831 = vmatpush1.msra.mxu0 0.0
        %1832 = vmatprep.subr.mxu0 0.0
        %1833 = vmatpush1.msra.mxu0 0.0
        %1834 = vmatprep.subr.mxu0 0.0
        %1835 = vmatpush1.msra.mxu0 0.0
        %1836 = vmatprep.subr.mxu0 0.0
        %1837 = vmatpush1.msra.mxu0 0.0
        %1838 = vmatprep.subr.mxu0 0.0
        %1839 = vmatpush1.msra.mxu0 0.0
        %1840 = vmatprep.subr.mxu0 0.0
        %1841 = vmatpush1.msra.mxu0 0.0
        %1842 = vmatprep.subr.mxu0 0.0
        %1843 = vmatpush1.msra.mxu0 0.0
        %1844 = vmatprep.subr.mxu0 0.0
        %1845 = vmatpush1.msra.mxu0 0.0
        %1846 = vmatprep.subr.mxu0 0.0
        %1847 = vmatpush1.msra.mxu0 0.0
        %1848 = vmatprep.subr.mxu0 0.0
        %1849 = vmatpush1.msra.mxu0 0.0
        %1850 = vmatprep.subr.mxu0 0.0
        %1851 = vmatpush1.msra.mxu0 0.0
        %1852 = vmatprep.subr.mxu0 0.0
        %1853 = vmatpush1.msra.mxu0 0.0
        %1854 = vmatprep.subr.mxu0 0.0
        %1855 = vmatpush1.msra.mxu0 0.0
        %1856 = vmatprep.subr.mxu0 0.0
        %1857 = vmatpush1.msra.mxu0 0.0
        %1858 = vmatprep.subr.mxu0 0.0
        %1859 = vmatpush1.msra.mxu0 0.0
        %1860 = vmatprep.subr.mxu0 0.0
        %1861 = vmatpush1.msra.mxu0 0.0
        %1862 = vmatprep.subr.mxu0 0.0
        %1863 = vmatpush1.msra.mxu0 0.0
        %1864 = vmatprep.subr.mxu0 0.0
        %1865 = vmatpush1.msra.mxu0 0.0
        %1866 = vmatprep.subr.mxu0 0.0
        %1867 = vmatpush1.msra.mxu0 0.0
        %1868 = vmatprep.subr.mxu0 0.0
        %1869 = vmatpush1.msra.mxu0 0.0
        %1870 = vmatprep.subr.mxu0 0.0
        %1871 = vmatpush1.msra.mxu0 0.0
        %1872 = vmatprep.subr.mxu0 0.0
        %1873 = vmatpush1.msra.mxu0 0.0
        %1874 = vmatprep.subr.mxu0 0.0
        %1875 = vmatpush1.msra.mxu0 0.0
        %1876 = vmatprep.subr.mxu0 0.0
        %1877 = vmatpush1.msra.mxu0 0.0
        %1878 = vmatprep.subr.mxu0 0.0
        %1879 = vmatpush1.msra.mxu0 0.0
        %1880 = vmatprep.subr.mxu0 0.0
        %1881 = vmatpush1.msra.mxu0 0.0
        %1882 = vmatprep.subr.mxu0 0.0
        %1883 = vmatpush1.msra.mxu0 0.0
        %1884 = vmatprep.subr.mxu0 0.0
        %1885 = vmatpush1.msra.mxu0 0.0
        %1886 = vmatprep.mubr.f32.mxu0 0.0
        %1887 = vmatmul.mubr.f32.gmra.mrb[0].mxu0 %v1817
        %v1888 = vpop.f32.mrb[0].mxu0
        %v1889 = vadd.f32 0.0, %v1888
        %v1890 = vpop.f32.mrb[0].mxu0
        %1891 = vmatprep.mubr.f32.mxu0 0.0
        %1892 = vmatmul.mubr.f32.gmra.mrb[0].mxu0 %v1820
        %v1893 = vpop.f32.mrb[0].mxu0
        %v1894 = vadd.f32 0.0, %v1893
        %v1895 = vpop.f32.mrb[0].mxu0
        %1896 = vdwg.mxu0
        %1899 = vrot.lane.b32.xlu0 %v1889, 96
        %v1900 = vpop.permute.xlu0 %1899
        %1901 = vrot.lane.b32.xlu0 %v1894, 96
        %v1902 = vpop.permute.xlu0 %1901
        %vm1905 = vcmask 917248
        %1906 = vst.msk [vmem:[#allocation2] sm:$0xff] %vm1905, %v1900
        %1907 = vst.msk [vmem:[#allocation2 + $0x8] sm:$0xff] %vm1905, %v1902
        %1908 = vrot.lane.b32.xlu0 %v362, 16
        %v1909 = vpop.permute.xlu0 %1908
        %1910 = vrot.lane.b32.xlu0 %v368, 16
        %v1911 = vpop.permute.xlu0 %1910
        %1912 = vrot.lane.b32.xlu0 %v364, 16
        %v1913 = vpop.permute.xlu0 %1912
        %1914 = vrot.lane.b32.xlu0 %v370, 16
        %v1915 = vpop.permute.xlu0 %1914
        %v1916 = vsel %vm447, %v1909, 0
        %v1918 = vsel %vm447, %v1911, 0
        %v1920 = vsel %vm447, %v1913, 0
        %v1922 = vsel %vm447, %v1915, 0
        %1924 = vmatprep.subr.mxu0 0.0
        %1925 = vmatpush1.xpose.msra.mxu0 %v1920
        %1926 = vmatprep.subr.mxu0 0.0
        %1927 = vmatpush1.xpose.msra.mxu0 %v1922
        %1928 = vmatprep.subr.mxu0 0.0
        %1929 = vmatpush1.xpose.msra.mxu0 0.0
        %1930 = vmatprep.subr.mxu0 0.0
        %1931 = vmatpush1.xpose.msra.mxu0 0.0
        %1932 = vmatprep.subr.mxu0 0.0
        %1933 = vmatpush1.xpose.msra.mxu0 0.0
        %1934 = vmatprep.subr.mxu0 0.0
        %1935 = vmatpush1.xpose.msra.mxu0 0.0
        %1936 = vmatprep.subr.mxu0 0.0
        %1937 = vmatpush1.xpose.msra.mxu0 0.0
        %1938 = vmatprep.subr.mxu0 0.0
        %1939 = vmatpush1.xpose.msra.mxu0 0.0
        %1940 = vmatprep.subr.mxu0 0.0
        %1941 = vmatpush1.xpose.msra.mxu0 0.0
        %1942 = vmatprep.subr.mxu0 0.0
        %1943 = vmatpush1.xpose.msra.mxu0 0.0
        %1944 = vmatprep.subr.mxu0 0.0
        %1945 = vmatpush1.xpose.msra.mxu0 0.0
        %1946 = vmatprep.subr.mxu0 0.0
        %1947 = vmatpush1.xpose.msra.mxu0 0.0
        %1948 = vmatprep.subr.mxu0 0.0
        %1949 = vmatpush1.xpose.msra.mxu0 0.0
        %1950 = vmatprep.subr.mxu0 0.0
        %1951 = vmatpush1.xpose.msra.mxu0 0.0
        %1952 = vmatprep.subr.mxu0 0.0
        %1953 = vmatpush1.xpose.msra.mxu0 0.0
        %1954 = vmatprep.subr.mxu0 0.0
        %1955 = vmatpush1.xpose.msra.mxu0 0.0
        %1956 = vmatprep.subr.mxu0 0.0
        %1957 = vmatpush1.xpose.msra.mxu0 0.0
        %1958 = vmatprep.subr.mxu0 0.0
        %1959 = vmatpush1.xpose.msra.mxu0 0.0
        %1960 = vmatprep.subr.mxu0 0.0
        %1961 = vmatpush1.xpose.msra.mxu0 0.0
        %1962 = vmatprep.subr.mxu0 0.0
        %1963 = vmatpush1.xpose.msra.mxu0 0.0
        %1964 = vmatprep.subr.mxu0 0.0
        %1965 = vmatpush1.xpose.msra.mxu0 0.0
        %1966 = vmatprep.subr.mxu0 0.0
        %1967 = vmatpush1.xpose.msra.mxu0 0.0
        %1968 = vmatprep.subr.mxu0 0.0
        %1969 = vmatpush1.xpose.msra.mxu0 0.0
        %1970 = vmatprep.subr.mxu0 0.0
        %1971 = vmatpush1.xpose.msra.mxu0 0.0
        %1972 = vmatprep.subr.mxu0 0.0
        %1973 = vmatpush1.xpose.msra.mxu0 0.0
        %1974 = vmatprep.subr.mxu0 0.0
        %1975 = vmatpush1.xpose.msra.mxu0 0.0
        %1976 = vmatprep.subr.mxu0 0.0
        %1977 = vmatpush1.xpose.msra.mxu0 0.0
        %1978 = vmatprep.subr.mxu0 0.0
        %1979 = vmatpush1.xpose.msra.mxu0 0.0
        %1980 = vmatprep.subr.mxu0 0.0
        %1981 = vmatpush1.xpose.msra.mxu0 0.0
        %1982 = vmatprep.subr.mxu0 0.0
        %1983 = vmatpush1.xpose.msra.mxu0 0.0
        %1984 = vmatprep.subr.mxu0 0.0
        %1985 = vmatpush1.xpose.msra.mxu0 0.0
        %1986 = vmatprep.subr.mxu0 0.0
        %1987 = vmatpush1.xpose.msra.mxu0 0.0
        %1988 = vmatprep.mubr.f32.mxu0 0.0
        %1989 = vmatmul.mubr.f32.gmra.mrb[0].mxu0 %v1916
        %v1990 = vpop.f32.mrb[0].mxu0
        %v1991 = vadd.f32 0.0, %v1990
        %v1992 = vpop.f32.mrb[0].mxu0
        %1993 = vmatprep.mubr.f32.mxu0 0.0
        %1994 = vmatmul.mubr.f32.gmra.mrb[0].mxu0 %v1918
        %v1995 = vpop.f32.mrb[0].mxu0
        %v1996 = vadd.f32 0.0, %v1995
        %v1997 = vpop.f32.mrb[0].mxu0
        %1998 = vdwg.mxu0
        %v1999 = vsel %vm447, %v1991, -inf
        %2000 = vmax.xlane.f32.xlu0 %v1999
        %v2001 = vpop.xlane.xlu0 %2000
        %v2002 = vsel %vm447, %v1996, -inf
        %2003 = vmax.xlane.f32.xlu0 %v2002
        %v2004 = vpop.xlane.xlu0 %2003
        %v2005 = vsub.f32 %v1991, %v2001
        %v2006 = vsub.f32 %v1996, %v2004
        %v2007 = vmul.f32 %v2005, 1.442695
        %v2008 = vpow.pop %v2007
        %v2009 = vmul.f32 %v2006, 1.442695
        %v2010 = vpow.pop %v2009
        %v2011 = vsel %vm447, %v2008, 0.0
        %2012 = vadd.xlane.f32.xlu0 %v2011
        %v2013 = vpop.xlane.xlu0 %2012
        %v2014 = vsel %vm447, %v2010, 0.0
        %2015 = vadd.xlane.f32.xlu0 %v2014
        %v2016 = vpop.xlane.xlu0 %2015
        %v2017 = vrcp.pop %v2013
        %v2018 = vrcp.pop %v2016
        %v2019 = vmul.f32 %v2008, %v2017
        %v2020 = vmul.f32 %v2010, %v2018
        %2021 = vrot.lane.b32.xlu0 %v439, 16
        %v2022 = vpop.permute.xlu0 %2021
        %2023 = vrot.lane.b32.xlu0 %v444, 16
        %v2024 = vpop.permute.xlu0 %2023
        %v2028 = vsel %vm447, %v2019, 0
        %v2031 = vsel %vm447, %v2020, 0
        %2033 = vmatprep.subr.mxu0 0.0
        %2034 = vmatpush1.msra.mxu0 %v2022
        %2035 = vmatprep.subr.mxu0 0.0
        %2036 = vmatpush1.msra.mxu0 %v2024
        %2037 = vmatprep.subr.mxu0 0.0
        %2038 = vmatpush1.msra.mxu0 0.0
        %2039 = vmatprep.subr.mxu0 0.0
        %2040 = vmatpush1.msra.mxu0 0.0
        %2041 = vmatprep.subr.mxu0 0.0
        %2042 = vmatpush1.msra.mxu0 0.0
        %2043 = vmatprep.subr.mxu0 0.0
        %2044 = vmatpush1.msra.mxu0 0.0
        %2045 = vmatprep.subr.mxu0 0.0
        %2046 = vmatpush1.msra.mxu0 0.0
        %2047 = vmatprep.subr.mxu0 0.0
        %2048 = vmatpush1.msra.mxu0 0.0
        %2049 = vmatprep.subr.mxu0 0.0
        %2050 = vmatpush1.msra.mxu0 0.0
        %2051 = vmatprep.subr.mxu0 0.0
        %2052 = vmatpush1.msra.mxu0 0.0
        %2053 = vmatprep.subr.mxu0 0.0
        %2054 = vmatpush1.msra.mxu0 0.0
        %2055 = vmatprep.subr.mxu0 0.0
        %2056 = vmatpush1.msra.mxu0 0.0
        %2057 = vmatprep.subr.mxu0 0.0
        %2058 = vmatpush1.msra.mxu0 0.0
        %2059 = vmatprep.subr.mxu0 0.0
        %2060 = vmatpush1.msra.mxu0 0.0
        %2061 = vmatprep.subr.mxu0 0.0
        %2062 = vmatpush1.msra.mxu0 0.0
        %2063 = vmatprep.subr.mxu0 0.0
        %2064 = vmatpush1.msra.mxu0 0.0
        %2065 = vmatprep.subr.mxu0 0.0
        %2066 = vmatpush1.msra.mxu0 0.0
        %2067 = vmatprep.subr.mxu0 0.0
        %2068 = vmatpush1.msra.mxu0 0.0
        %2069 = vmatprep.subr.mxu0 0.0
        %2070 = vmatpush1.msra.mxu0 0.0
        %2071 = vmatprep.subr.mxu0 0.0
        %2072 = vmatpush1.msra.mxu0 0.0
        %2073 = vmatprep.subr.mxu0 0.0
        %2074 = vmatpush1.msra.mxu0 0.0
        %2075 = vmatprep.subr.mxu0 0.0
        %2076 = vmatpush1.msra.mxu0 0.0
        %2077 = vmatprep.subr.mxu0 0.0
        %2078 = vmatpush1.msra.mxu0 0.0
        %2079 = vmatprep.subr.mxu0 0.0
        %2080 = vmatpush1.msra.mxu0 0.0
        %2081 = vmatprep.subr.mxu0 0.0
        %2082 = vmatpush1.msra.mxu0 0.0
        %2083 = vmatprep.subr.mxu0 0.0
        %2084 = vmatpush1.msra.mxu0 0.0
        %2085 = vmatprep.subr.mxu0 0.0
        %2086 = vmatpush1.msra.mxu0 0.0
        %2087 = vmatprep.subr.mxu0 0.0
        %2088 = vmatpush1.msra.mxu0 0.0
        %2089 = vmatprep.subr.mxu0 0.0
        %2090 = vmatpush1.msra.mxu0 0.0
        %2091 = vmatprep.subr.mxu0 0.0
        %2092 = vmatpush1.msra.mxu0 0.0
        %2093 = vmatprep.subr.mxu0 0.0
        %2094 = vmatpush1.msra.mxu0 0.0
        %2095 = vmatprep.subr.mxu0 0.0
        %2096 = vmatpush1.msra.mxu0 0.0
        %2097 = vmatprep.mubr.f32.mxu0 0.0
        %2098 = vmatmul.mubr.f32.gmra.mrb[0].mxu0 %v2028
        %v2099 = vpop.f32.mrb[0].mxu0
        %v2100 = vadd.f32 0.0, %v2099
        %v2101 = vpop.f32.mrb[0].mxu0
        %2102 = vmatprep.mubr.f32.mxu0 0.0
        %2103 = vmatmul.mubr.f32.gmra.mrb[0].mxu0 %v2031
        %v2104 = vpop.f32.mrb[0].mxu0
        %v2105 = vadd.f32 0.0, %v2104
        %v2106 = vpop.f32.mrb[0].mxu0
        %2107 = vdwg.mxu0
        %2110 = vrot.lane.b32.xlu0 %v2100, 112
        %v2111 = vpop.permute.xlu0 %2110
        %2112 = vrot.lane.b32.xlu0 %v2105, 112
        %v2113 = vpop.permute.xlu0 %2112
        %vm2116 = vcmask 1048448
        %2117 = vst.msk [vmem:[#allocation2] sm:$0xff] %vm2116, %v2111
        %2118 = vst.msk [vmem:[#allocation2 + $0x8] sm:$0xff] %vm2116, %v2113
        %v2119 = vld [vmem:[#allocation2] sm:$0xff]
        %v2120 = vld [vmem:[#allocation2 + $0x8] sm:$0xff]
        %v2121 = vld [vmem:[#allocation8] sm:$0xff]
        %v2122 = vld [vmem:[#allocation8 + $0x8] sm:$0xff]
        %v2123 = vld [vmem:[#allocation8 + $0x10] sm:$0xff]
        %v2124 = vld [vmem:[#allocation8 + $0x18] sm:$0xff]
        %v2125 = vld [vmem:[#allocation8 + $0x20] sm:$0xff]
        %v2126 = vld [vmem:[#allocation8 + $0x28] sm:$0xff]
        %v2127 = vld [vmem:[#allocation8 + $0x30] sm:$0xff]
        %v2128 = vld [vmem:[#allocation8 + $0x38] sm:$0xff]
        %v2129 = vld [vmem:[#allocation8 + $0x40] sm:$0xff]
        %v2130 = vld [vmem:[#allocation8 + $0x48] sm:$0xff]
        %v2131 = vld [vmem:[#allocation8 + $0x50] sm:$0xff]
        %v2132 = vld [vmem:[#allocation8 + $0x58] sm:$0xff]
        %v2133 = vld [vmem:[#allocation8 + $0x60] sm:$0xff]
        %v2134 = vld [vmem:[#allocation8 + $0x68] sm:$0xff]
        %v2135 = vld [vmem:[#allocation8 + $0x70] sm:$0xff]
        %v2136 = vld [vmem:[#allocation8 + $0x78] sm:$0xff]
        %v2137 = vld [vmem:[%s3] sm:$0x1]
        %v2139 = vlaneseq
        %v2140 = vshrl.u32 %v2139, 7
        %v2141 = vsub.s32 0, %v2140
        %v2142 = vrot.slane %v2137, %v2141
        %2144 = vmatprep.subr.mxu0 0.0
        %2145 = vmatpush1.msra.mxu0 %v2121
        %2146 = vmatprep.subr.mxu0 0.0
        %2147 = vmatpush1.msra.mxu0 %v2122
        %2148 = vmatprep.subr.mxu0 0.0
        %2149 = vmatpush1.msra.mxu0 %v2123
        %2150 = vmatprep.subr.mxu0 0.0
        %2151 = vmatpush1.msra.mxu0 %v2124
        %2152 = vmatprep.subr.mxu0 0.0
        %2153 = vmatpush1.msra.mxu0 %v2125
        %2154 = vmatprep.subr.mxu0 0.0
        %2155 = vmatpush1.msra.mxu0 %v2126
        %2156 = vmatprep.subr.mxu0 0.0
        %2157 = vmatpush1.msra.mxu0 %v2127
        %2158 = vmatprep.subr.mxu0 0.0
        %2159 = vmatpush1.msra.mxu0 %v2128
        %2160 = vmatprep.subr.mxu0 0.0
        %2161 = vmatpush1.msra.mxu0 %v2129
        %2162 = vmatprep.subr.mxu0 0.0
        %2163 = vmatpush1.msra.mxu0 %v2130
        %2164 = vmatprep.subr.mxu0 0.0
        %2165 = vmatpush1.msra.mxu0 %v2131
        %2166 = vmatprep.subr.mxu0 0.0
        %2167 = vmatpush1.msra.mxu0 %v2132
        %2168 = vmatprep.subr.mxu0 0.0
        %2169 = vmatpush1.msra.mxu0 %v2133
        %2170 = vmatprep.subr.mxu0 0.0
        %2171 = vmatpush1.msra.mxu0 %v2134
        %2172 = vmatprep.subr.mxu0 0.0
        %2173 = vmatpush1.msra.mxu0 %v2135
        %2174 = vmatprep.subr.mxu0 0.0
        %2175 = vmatpush1.msra.mxu0 %v2136
        %2176 = vmatprep.subr.mxu0 0.0
        %2177 = vmatpush1.msra.mxu0 0.0
        %2178 = vmatprep.subr.mxu0 0.0
        %2179 = vmatpush1.msra.mxu0 0.0
        %2180 = vmatprep.subr.mxu0 0.0
        %2181 = vmatpush1.msra.mxu0 0.0
        %2182 = vmatprep.subr.mxu0 0.0
        %2183 = vmatpush1.msra.mxu0 0.0
        %2184 = vmatprep.subr.mxu0 0.0
        %2185 = vmatpush1.msra.mxu0 0.0
        %2186 = vmatprep.subr.mxu0 0.0
        %2187 = vmatpush1.msra.mxu0 0.0
        %2188 = vmatprep.subr.mxu0 0.0
        %2189 = vmatpush1.msra.mxu0 0.0
        %2190 = vmatprep.subr.mxu0 0.0
        %2191 = vmatpush1.msra.mxu0 0.0
        %2192 = vmatprep.subr.mxu0 0.0
        %2193 = vmatpush1.msra.mxu0 0.0
        %2194 = vmatprep.subr.mxu0 0.0
        %2195 = vmatpush1.msra.mxu0 0.0
        %2196 = vmatprep.subr.mxu0 0.0
        %2197 = vmatpush1.msra.mxu0 0.0
        %2198 = vmatprep.subr.mxu0 0.0
        %2199 = vmatpush1.msra.mxu0 0.0
        %2200 = vmatprep.subr.mxu0 0.0
        %2201 = vmatpush1.msra.mxu0 0.0
        %2202 = vmatprep.subr.mxu0 0.0
        %2203 = vmatpush1.msra.mxu0 0.0
        %2204 = vmatprep.subr.mxu0 0.0
        %2205 = vmatpush1.msra.mxu0 0.0
        %2206 = vmatprep.subr.mxu0 0.0
        %2207 = vmatpush1.msra.mxu0 0.0
        %2208 = vmatprep.mubr.f32.mxu0 0.0
        %2209 = vmatmul.mubr.f32.gmra.mrb[0].mxu0 %v2119
        %v2210 = vpop.f32.mrb[0].mxu0
        %v2211 = vadd.f32 %v2142, %v2210
        %v2212 = vpop.f32.mrb[0].mxu0
        %2213 = vmatprep.mubr.f32.mxu0 0.0
        %2214 = vmatmul.mubr.f32.gmra.mrb[0].mxu0 %v2120
        %v2215 = vpop.f32.mrb[0].mxu0
        %v2216 = vadd.f32 %v2142, %v2215
        %v2217 = vpop.f32.mrb[0].mxu0
        %2218 = vdwg.mxu0
        %2219 = vst [vmem:[%s244] sm:$0xff] %v2211
        %2220 = vst [vmem:[%s244 + $0x8] sm:$0xff] %v2216
        %s2221 = sand.u32 %s119, 1
        %s2222 = scalar_lea.sflag [#allocation5], %s2221
        %s2223 = sand.u32 %s119, 1
        %s2224 = smul.addr %s2223, 16
        %s2225 = scalar_lea.vmem [#allocation9], %s2224
        // Predicated region
        $region49: #{tpu_custom_call.1} parent=35 // pred_check
          %p2226 = pneg %p129
        $region50: #{tpu_custom_call.1} parent=35 // pred_check_branch
          %2228 = sbr.rel (%p2226) target = $region52
        $region51: #{tpu_custom_call.1} parent=35 // pred_region
          %s2230 = ssub.s32 256, 256
          %2231 = vsyncadd %s2222, %s2230
          %s2232 = smul.addr %s22, 2
          %s2233 = smul.addr %s2232, 128
          %s2234 = scalar_lea.hbm %s4, %s2233
          %s2235 = sshll.u32 %s2225, 4
          %s2236 = int_to_ptr.vmem [resolvable:$true] %s2235
          %2241 = dma.vmem_to_hbm [thread:$0]  %s2236, 256, %s2234, %s2222, 128, 128, 8
        $region52: #{tpu_custom_call.1} parent=35 // pred_fallthru
          _
      $region36: #{tpu_custom_call.1} parent=5 // pred_fallthru
        _
      %p2242 = scmp.le.s32.totalorder 2, %s17
      // Predicated region
      $region53: #{tpu_custom_call.1} parent=5 // pred_check
        %p2243 = pneg %p2242
      $region54: #{tpu_custom_call.1} parent=5 // pred_check_branch
        %2245 = sbr.rel (%p2243) target = $region56
      $region55: #{tpu_custom_call.1} parent=5 // pred_region
        %s2246 = ssub.s32 %s17, 2
        // Predicated region
        $region57: #{tpu_custom_call.1} parent=55 // pred_check
          %p2247 = pneg %p135
        $region58: #{tpu_custom_call.1} parent=55 // pred_check_branch
          %2249 = sbr.rel (%p2247) target = $region60
        $region59: #{tpu_custom_call.1} parent=55 // pred_region
          %s2250 = sand.u32 %s120, 1
          %s2251 = scalar_lea.sflag [#allocation5], %s2250
          %s2252 = sand.u32 %s120, 1
          %s2253 = smul.addr %s2252, 16
          %s2254 = scalar_lea.vmem [#allocation9], %s2253
          %2255 = dma.done %s2251, 256
        $region60: #{tpu_custom_call.1} parent=55 // pred_fallthru
          _
      $region56: #{tpu_custom_call.1} parent=5 // pred_fallthru
        _
    $region6: #{tpu_custom_call.1} parent=1 // loop_footer
      %s21 = sadd.s32 1, %s17
    $region7: #{tpu_custom_call.1} parent=1 // loop_footer_branch
      %16 = sbr.rel target = $region3
    $region8: #{tpu_custom_call.1} parent=1 // loop_exit
      _
    %2256 = vsyncpa [#allocation4], 1
    %s2257 = scalar_lea.sflag [#allocation4], 1
    %2258 = vsyncpa %s2257, 1
    %2259 = vsyncpa [#allocation7], 1
    %2260 = vsyncpa [#allocation5], 1
    %s2261 = scalar_lea.sflag [#allocation5], 1
    %2262 = vsyncpa %s2261, 1

</llo_original>
